<compile_context>
chip_gen: v7x
topology: tpu7x:2x2x1
jax: 0.10.0
libtpu: 0.0.40
codegen_flags: <defaults>
</compile_context>

<pallas_src>
import math

import jax
import jax.numpy as jnp
from jax.experimental import pallas as pl
from jax.experimental.pallas import tpu as pltpu


# ---------------------------------------------------------------------------
# Fused decoder kernel: one grid step == one self-attention layer
# ---------------------------------------------------------------------------
def _decoder_kernel(cur_len_ref, x_ref, wqkv_ref, bqkv_ref, wo_ref, bo_ref,
                    kpast_ref, vpast_ref,
                    out_ref, kc_hbm_ref, vc_hbm_ref,
                    knew_buf, vnew_buf, dma_sems):
    layer = pl.program_id(0)
    bs, d = x_ref.shape
    b = kpast_ref.shape[1]
    s = bs // b
    scale = 1.0 / math.sqrt(d)

    # Layer 0: load the input activation into the VMEM-resident output block,
    # which doubles as the cross-layer activation carry (constant block index).
    @pl.when(layer == 0)
    def _():
        out_ref[...] = x_ref[...]

    x2d = out_ref[...]                                     # (B*S, D) f32 carry

    # --- fused QKV projection: one lane-dense (B*S, 3D) MXU matmul ----------
    # bf16 inputs, f32 accumulation (weights are streamed as bf16).
    qkv = jnp.dot(x2d.astype(jnp.bfloat16), wqkv_ref[0],
                  preferred_element_type=jnp.float32) + bqkv_ref[0]
    q = (qkv[:, :d] * scale).reshape(b, s, d)              # scale q, not scores
    k_new = qkv[:, d:2 * d].reshape(b, s, d)
    v_new = qkv[:, 2 * d:].reshape(b, s, d)

    # --- in-place KV-cache update: DMA only the S new rows into the aliased
    # --- HBM cache at offset cur_len.  Started now so the small writes
    # --- overlap with the attention compute below.  (The written rows are
    # --- never read in this call, so write-after-read hazards cannot occur.)
    start = cur_len_ref[0]
    knew_buf[0] = k_new
    vnew_buf[0] = v_new
    copy_k = pltpu.make_async_copy(
        knew_buf, kc_hbm_ref.at[pl.ds(layer, 1), :, pl.ds(start, s), :],
        dma_sems.at[0])
    copy_v = pltpu.make_async_copy(
        vnew_buf, vc_hbm_ref.at[pl.ds(layer, 1), :, pl.ds(start, s), :],
        dma_sems.at[1])
    copy_k.start()
    copy_v.start()

    # --- attention over [valid past rows] + [new rows]; no mask among the new
    # --- tokens (matches the reference).  Softmax math stays in f32. --------
    k_past = kpast_ref[0]                                  # (B, T_max, D) f32
    v_past = vpast_ref[0]
    q_b = q.astype(jnp.bfloat16)
    s_past = jnp.einsum('bsd,btd->bst', q_b, k_past.astype(jnp.bfloat16),
                        preferred_element_type=jnp.float32)
    t_idx = jax.lax.broadcasted_iota(jnp.int32, s_past.shape, 2)
    s_past = jnp.where(t_idx < start, s_past, -1e30)       # mask unwritten rows
    s_new = jnp.einsum('bsd,btd->bst', q_b, k_new.astype(jnp.bfloat16),
                       preferred_element_type=jnp.float32)

    m = jnp.maximum(jnp.max(s_past, axis=-1, keepdims=True),
                    jnp.max(s_new, axis=-1, keepdims=True))
    e_past = jnp.exp(s_past - m)
    e_new = jnp.exp(s_new - m)
    denom = (jnp.sum(e_past, axis=-1, keepdims=True)
             + jnp.sum(e_new, axis=-1, keepdims=True))
    inv = pl.reciprocal(denom, approx=True)                # EUP reciprocal
    ctx = (jnp.einsum('bst,btd->bsd', e_past.astype(jnp.bfloat16),
                      v_past.astype(jnp.bfloat16),
                      preferred_element_type=jnp.float32)
           + jnp.einsum('bst,btd->bsd', e_new.astype(jnp.bfloat16),
                        v_new.astype(jnp.bfloat16),
                        preferred_element_type=jnp.float32))
    ctx2d = (ctx * inv).reshape(bs, d)

    # --- output projection; overwrite the carry (next layer reads it back) --
    out_ref[...] = (jnp.dot(ctx2d.astype(jnp.bfloat16), wo_ref[0],
                            preferred_element_type=jnp.float32) + bo_ref[0])

    copy_k.wait()
    copy_v.wait()


# ---------------------------------------------------------------------------
# Wrapper (single pallas_call per decoder step, in-place KV cache)
# ---------------------------------------------------------------------------
def prepare_decoder_params(layer_params):
    """Stack per-layer weights ONCE, outside the per-step hot path."""
    wqkv = jnp.stack([jnp.concatenate([p['wq'], p['wk'], p['wv']], axis=1)
                      for p in layer_params]).astype(jnp.bfloat16)    # (L,D,3D)
    bqkv = jnp.stack([jnp.concatenate([p['bq'], p['bk'], p['bv']], axis=1)
                      for p in layer_params]).astype(jnp.float32)     # (L,1,3D)
    wo = jnp.stack([p['wo'] for p in layer_params]).astype(jnp.bfloat16)
    bo = jnp.stack([p['bo'] for p in layer_params]).astype(jnp.float32)
    return {'wqkv': wqkv, 'bqkv': bqkv, 'wo': wo, 'bo': bo}


def init_kv_cache(n_layers, batch, t_max, d_model, dtype=jnp.float32):
    k = jnp.zeros((n_layers, batch, t_max, d_model), dtype)
    return k, jnp.zeros_like(k)


def _decoder_step(x, packed, k_cache, v_cache, cur_len):
    L, B, t_max, D = k_cache.shape
    assert x.shape[0] == B and x.shape[2] == D
    S = x.shape[1]
    BS = B * S
    x2d = x.reshape(BS, D)
    cur = jnp.asarray(cur_len, jnp.int32).reshape((1,))

    out2d, k_cache, v_cache = pl.pallas_call(
        _decoder_kernel,
        grid=(L,),
        in_specs=[
            pl.BlockSpec(memory_space=pltpu.MemorySpace.SMEM),        # cur_len
            pl.BlockSpec((BS, D), lambda l: (0, 0)),                  # x (resident)
            pl.BlockSpec((1, D, 3 * D), lambda l: (l, 0, 0)),         # wqkv[l]
            pl.BlockSpec((1, 1, 3 * D), lambda l: (l, 0, 0)),         # bqkv[l]
            pl.BlockSpec((1, D, D), lambda l: (l, 0, 0)),             # wo[l]
            pl.BlockSpec((1, 1, D), lambda l: (l, 0, 0)),             # bo[l]
            pl.BlockSpec((1, B, t_max, D), lambda l: (l, 0, 0, 0)),   # k_cache[l]
            pl.BlockSpec((1, B, t_max, D), lambda l: (l, 0, 0, 0)),   # v_cache[l]
        ],
        out_specs=(
            pl.BlockSpec((BS, D), lambda l: (0, 0)),                  # out / carry
            pl.BlockSpec(memory_space=pl.ANY),                        # k cache (aliased)
            pl.BlockSpec(memory_space=pl.ANY),                        # v cache (aliased)
        ),
        out_shape=(
            jax.ShapeDtypeStruct((BS, D), jnp.float32),
            jax.ShapeDtypeStruct((L, B, t_max, D), k_cache.dtype),
            jax.ShapeDtypeStruct((L, B, t_max, D), v_cache.dtype),
        ),
        scratch_shapes=[
            pltpu.VMEM((1, B, S, D), jnp.float32),                    # k_new staging
            pltpu.VMEM((1, B, S, D), jnp.float32),                    # v_new staging
            pltpu.SemaphoreType.DMA((2,)),
        ],
        input_output_aliases={6: 1, 7: 2},                            # in-place caches
        compiler_params=pltpu.CompilerParams(
            dimension_semantics=("arbitrary",),    # layer axis is sequential (carry)
            vmem_limit_bytes=48 * 1024 * 1024,     # within v7x's 64 MiB budget too
        ),
    )(cur, x2d, packed['wqkv'], packed['bqkv'], packed['wo'], packed['bo'],
      k_cache, v_cache)
    return out2d.reshape(B, S, D), k_cache, v_cache


# Donate the caches so the aliased in-place update truly reuses their buffers
# (no O(T_max) copy per step).  Callers must rebind to the returned caches.
decoder_step = jax.jit(_decoder_step, donate_argnums=(2, 3))


# ---------------------------------------------------------------------------
# Pure-JAX reference (for correctness check only)
# ---------------------------------------------------------------------------
def _ref_layer(x, past_kv, p):
    d = x.shape[-1]
    q = x @ p['wq'] + p['bq']
    k = x @ p['wk'] + p['bk']
    v = x @ p['wv'] + p['bv']
    if past_kv is not None:
        k = jnp.concatenate([past_kv[0], k], axis=1)
        v = jnp.concatenate([past_kv[1], v], axis=1)
    s = jnp.einsum('bsd,btd->bst', q, k) / math.sqrt(d)
    w = jax.nn.softmax(s, axis=-1)
    out = jnp.einsum('bst,btd->bsd', w, v) @ p['wo'] + p['bo']
    return out, (k, v)


def _ref_decoder(x, layer_params, past_kv_list=None):
    if past_kv_list is None:
        past_kv_list = [None] * len(layer_params)
    new_kv, out = [], x
    for p, past in zip(layer_params, past_kv_list):
        out, kv = _ref_layer(out, past, p)
        new_kv.append(kv)
    return out, new_kv


# ---------------------------------------------------------------------------
# Deterministic parameter init
# ---------------------------------------------------------------------------
def init_params(key, d_model, n_layers):
    params = []
    for _ in range(n_layers):
        layer = {}
        for name in ('q', 'k', 'v', 'o'):
            key, kw, kb = jax.random.split(key, 3)
            layer['w' + name] = (0.05 * jax.random.normal(kw, (d_model, d_model))
                                 ).astype(jnp.float32)
            layer['b' + name] = (0.05 * jax.random.normal(kb, (1, d_model))
                                 ).astype(jnp.float32)
        params.append(layer)
    return params


if __name__ == "__main__":
    d_model, n_layers = 128, 2          # d_model multiple of 128 => lane-dense
    batch, prefill_len, step_len = 2, 8, 4
    t_max = 16                          # persistent cache capacity

    key = jax.random.PRNGKey(0)
    key, kx, kx2 = jax.random.split(key, 3)
    params = init_params(key, d_model, n_layers)
    packed = prepare_decoder_params(params)               # one-time stacking
    k_cache, v_cache = init_kv_cache(n_layers, batch, t_max, d_model)

    x = jax.random.normal(kx, (batch, prefill_len, d_model), dtype=jnp.float32)
    x_new = jax.random.normal(kx2, (batch, step_len, d_model),
                              dtype=jnp.float32)

    # Step 1: "prefill" into an empty cache (cur_len = 0).
    out1, k_cache, v_cache = decoder_step(x, packed, k_cache, v_cache, 0)
    # Step 2: incremental step appending to the in-place caches.
    out2, k_cache, v_cache = decoder_step(x_new, packed, k_cache, v_cache,
                                          prefill_len)
    jax.block_until_ready((out1, out2, k_cache, v_cache))

    # Verify against a pure-f32 JAX reference.  Tolerance accounts for bf16
    # matmul inputs and the approximate EUP reciprocal in the softmax.
    ref1, ref_kv = _ref_decoder(x, params, None)
    ref2, ref_kv2 = _ref_decoder(x_new, params, ref_kv)
    tol = dict(atol=2e-2, rtol=2e-2)
    assert jnp.allclose(out1, ref1, **tol)
    assert jnp.allclose(out2, ref2, **tol)
    total = prefill_len + step_len
    for l in range(n_layers):
        assert jnp.allclose(k_cache[l, :, :total, :], ref_kv2[l][0], **tol)
        assert jnp.allclose(v_cache[l, :, :total, :], ref_kv2[l][1], **tol)

    print("KERNEL_OK")
</pallas_src>

<mosaic_0001>
module attributes {stable_mosaic.version = 11 : i64} {
  func.func @_decoder_kernel(%arg0: i32, %arg1: memref<1xi32, #tpu.memory_space<smem>>, %arg2: memref<16x128xf32, #tpu.memory_space<vmem>>, %arg3: memref<1x128x384xbf16, #tpu.memory_space<vmem>>, %arg4: memref<1x1x384xf32, #tpu.memory_space<vmem>>, %arg5: memref<1x128x128xbf16, #tpu.memory_space<vmem>>, %arg6: memref<1x1x128xf32, #tpu.memory_space<vmem>>, %arg7: memref<1x2x16x128xf32, #tpu.memory_space<vmem>>, %arg8: memref<1x2x16x128xf32, #tpu.memory_space<vmem>>, %arg9: memref<16x128xf32, #tpu.memory_space<vmem>>, %arg10: memref<2x2x16x128xf32, #tpu.memory_space<any>>, %arg11: memref<2x2x16x128xf32, #tpu.memory_space<any>>, %arg12: memref<1x2x8x128xf32, #tpu.memory_space<vmem>>, %arg13: memref<1x2x8x128xf32, #tpu.memory_space<vmem>>, %arg14: memref<2x!tpu.dma_semaphore, #tpu.memory_space<semaphore_mem>>) attributes {dimension_semantics = [#tpu.dimension_semantics<arbitrary>], iteration_bounds = array<i64: 2>, scalar_prefetch = 0 : i64, scratch_operands = 3 : i64, tpu.core_type = #tpu.core_type<tc>, window_params = [{transform_indices = @transform_0, window_bounds = array<i64: 1>}, {pipeline_mode = #tpu.pipeline_mode<synchronous>, transform_indices = @transform_1, window_bounds = array<i64: 16, 128>}, {transform_indices = @transform_2, window_bounds = array<i64: 1, 128, 384>}, {transform_indices = @transform_3, window_bounds = array<i64: 1, 1, 384>}, {transform_indices = @transform_4, window_bounds = array<i64: 1, 128, 128>}, {transform_indices = @transform_5, window_bounds = array<i64: 1, 1, 128>}, {transform_indices = @transform_6, window_bounds = array<i64: 1, 2, 16, 128>}, {transform_indices = @transform_7, window_bounds = array<i64: 1, 2, 16, 128>}, {pipeline_mode = #tpu.pipeline_mode<synchronous>, transform_indices = @transform_8, window_bounds = array<i64: 16, 128>}, {}, {}]} {
    %c0_i32 = arith.constant 0 : i32
    %0 = arith.cmpi eq, %arg0, %c0_i32 : i32
    %1 = arith.extui %0 : i1 to i32
    %c0_i32_0 = arith.constant 0 : i32
    %2 = arith.cmpi ne, %1, %c0_i32_0 : i32
    scf.if %2 {
      %c0_55 = arith.constant 0 : index
      %c0_56 = arith.constant 0 : index
      %89 = vector.load %arg2[%c0_55, %c0_56] : memref<16x128xf32, #tpu.memory_space<vmem>>, vector<16x128xf32>
      %c0_57 = arith.constant 0 : index
      %c0_58 = arith.constant 0 : index
      %90 = vector.load %arg9[%c0_57, %c0_58] : memref<16x128xf32, #tpu.memory_space<vmem>>, vector<16x128xf32>
      tpu.vector_store %arg9[%c0_57, %c0_58], %89 {strides = array<i32>} : memref<16x128xf32, #tpu.memory_space<vmem>>, vector<16x128xf32>,
    } else {
    }
    %c0 = arith.constant 0 : index
    %c0_1 = arith.constant 0 : index
    %3 = vector.load %arg9[%c0, %c0_1] : memref<16x128xf32, #tpu.memory_space<vmem>>, vector<16x128xf32>
    %4 = arith.truncf %3 : vector<16x128xf32> to vector<16x128xbf16>
    %c0_2 = arith.constant 0 : index
    %c0_3 = arith.constant 0 : index
    %c0_4 = arith.constant 0 : index
    %5 = vector.load %arg3[%c0_2, %c0_3, %c0_4] : memref<1x128x384xbf16, #tpu.memory_space<vmem>>, vector<1x128x384xbf16>
    %6 = vector.shape_cast %5 : vector<1x128x384xbf16> to vector<128x384xbf16>
    %cst = arith.constant dense<0.000000e+00> : vector<16x384xf32>
    %7 = tpu.matmul %4, %6, %cst {dimension_numbers = #tpu.dot_dimension_numbers<[1], [0], [0], [1], [0, 0, 1, 1], [], []>} : vector<16x128xbf16>, vector<128x384xbf16>, vector<16x384xf32> -> vector<16x384xf32>
    %c0_5 = arith.constant 0 : index
    %c0_6 = arith.constant 0 : index
    %c0_7 = arith.constant 0 : index
    %8 = vector.load %arg4[%c0_5, %c0_6, %c0_7] : memref<1x1x384xf32, #tpu.memory_space<vmem>>, vector<1x1x384xf32>
    %9 = vector.shape_cast %8 : vector<1x1x384xf32> to vector<1x384xf32>
    %10 = vector.broadcast %9 : vector<1x384xf32> to vector<16x384xf32>
    %11 = arith.addf %7, %10 : vector<16x384xf32>
    %12 = vector.extract_strided_slice %11 {offsets = [0, 0], sizes = [16, 128], strides = [1, 1]} : vector<16x384xf32> to vector<16x128xf32>
    %cst_8 = arith.constant 0.0883883461 : f32
    %13 = vector.broadcast %cst_8 : f32 to vector<16x128xf32>
    %14 = arith.mulf %12, %13 : vector<16x128xf32>
    %15 = vector.shape_cast %14 : vector<16x128xf32> to vector<2x8x128xf32>
    %16 = vector.extract_strided_slice %11 {offsets = [0, 128], sizes = [16, 128], strides = [1, 1]} : vector<16x384xf32> to vector<16x128xf32>
    %17 = vector.shape_cast %16 : vector<16x128xf32> to vector<2x8x128xf32>
    %18 = vector.extract_strided_slice %11 {offsets = [0, 256], sizes = [16, 128], strides = [1, 1]} : vector<16x384xf32> to vector<16x128xf32>
    %19 = vector.shape_cast %18 : vector<16x128xf32> to vector<2x8x128xf32>
    %c0_9 = arith.constant 0 : index
    %20 = memref.load %arg1[%c0_9] : memref<1xi32, #tpu.memory_space<smem>>
    %c0_10 = arith.constant 0 : index
    %c0_11 = arith.constant 0 : index
    %c0_12 = arith.constant 0 : index
    %c0_13 = arith.constant 0 : index
    %21 = vector.load %arg12[%c0_10, %c0_11, %c0_12, %c0_13] : memref<1x2x8x128xf32, #tpu.memory_space<vmem>>, vector<1x2x8x128xf32>
    %22 = vector.shape_cast %21 : vector<1x2x8x128xf32> to vector<2x8x128xf32>
    %23 = vector.shape_cast %17 : vector<2x8x128xf32> to vector<1x2x8x128xf32>
    tpu.vector_store %arg12[%c0_10, %c0_11, %c0_12, %c0_13], %23 {strides = array<i32>} : memref<1x2x8x128xf32, #tpu.memory_space<vmem>>, vector<1x2x8x128xf32>,
    %c0_14 = arith.constant 0 : index
    %c0_15 = arith.constant 0 : index
    %c0_16 = arith.constant 0 : index
    %c0_17 = arith.constant 0 : index
    %24 = vector.load %arg13[%c0_14, %c0_15, %c0_16, %c0_17] : memref<1x2x8x128xf32, #tpu.memory_space<vmem>>, vector<1x2x8x128xf32>
    %25 = vector.shape_cast %24 : vector<1x2x8x128xf32> to vector<2x8x128xf32>
    %26 = vector.shape_cast %19 : vector<2x8x128xf32> to vector<1x2x8x128xf32>
    tpu.vector_store %arg13[%c0_14, %c0_15, %c0_16, %c0_17], %26 {strides = array<i32>} : memref<1x2x8x128xf32, #tpu.memory_space<vmem>>, vector<1x2x8x128xf32>,
    %c0_i32_18 = arith.constant 0 : i32
    %c0_i32_19 = arith.constant 0 : i32
    %c0_i32_20 = arith.constant 0 : i32
    %27 = tpu.memref_slice %arg10[%arg0, %c0_i32_19, %20, %c0_i32_20] : memref<2x2x16x128xf32, #tpu.memory_space<any>> -> memref<1x2x8x128xf32, #tpu.memory_space<any>>
    %28 = tpu.memref_slice %arg14[%c0_i32_18] : memref<2x!tpu.dma_semaphore, #tpu.memory_space<semaphore_mem>> -> memref<1x!tpu.dma_semaphore, #tpu.memory_space<semaphore_mem>>
    %29 = tpu.memref_squeeze %28 : memref<1x!tpu.dma_semaphore, #tpu.memory_space<semaphore_mem>> -> memref<!tpu.dma_semaphore, #tpu.memory_space<semaphore_mem>>
    tpu.enqueue_dma source(%arg12 : memref<1x2x8x128xf32, #tpu.memory_space<vmem>>) target(%27 : memref<1x2x8x128xf32, #tpu.memory_space<any>>) target_semaphore(%29 : memref<!tpu.dma_semaphore, #tpu.memory_space<semaphore_mem>>)
    %c1_i32 = arith.constant 1 : i32
    %c0_i32_21 = arith.constant 0 : i32
    %c0_i32_22 = arith.constant 0 : i32
    %30 = tpu.memref_slice %arg11[%arg0, %c0_i32_21, %20, %c0_i32_22] : memref<2x2x16x128xf32, #tpu.memory_space<any>> -> memref<1x2x8x128xf32, #tpu.memory_space<any>>
    %31 = tpu.memref_slice %arg14[%c1_i32] : memref<2x!tpu.dma_semaphore, #tpu.memory_space<semaphore_mem>> -> memref<1x!tpu.dma_semaphore, #tpu.memory_space<semaphore_mem>>
    %32 = tpu.memref_squeeze %31 : memref<1x!tpu.dma_semaphore, #tpu.memory_space<semaphore_mem>> -> memref<!tpu.dma_semaphore, #tpu.memory_space<semaphore_mem>>
    tpu.enqueue_dma source(%arg13 : memref<1x2x8x128xf32, #tpu.memory_space<vmem>>) target(%30 : memref<1x2x8x128xf32, #tpu.memory_space<any>>) target_semaphore(%32 : memref<!tpu.dma_semaphore, #tpu.memory_space<semaphore_mem>>)
    %c0_23 = arith.constant 0 : index
    %c0_24 = arith.constant 0 : index
    %c0_25 = arith.constant 0 : index
    %c0_26 = arith.constant 0 : index
    %33 = vector.load %arg7[%c0_23, %c0_24, %c0_25, %c0_26] : memref<1x2x16x128xf32, #tpu.memory_space<vmem>>, vector<1x2x16x128xf32>
    %34 = vector.shape_cast %33 : vector<1x2x16x128xf32> to vector<2x16x128xf32>
    %c0_27 = arith.constant 0 : index
    %c0_28 = arith.constant 0 : index
    %c0_29 = arith.constant 0 : index
    %c0_30 = arith.constant 0 : index
    %35 = vector.load %arg8[%c0_27, %c0_28, %c0_29, %c0_30] : memref<1x2x16x128xf32, #tpu.memory_space<vmem>>, vector<1x2x16x128xf32>
    %36 = vector.shape_cast %35 : vector<1x2x16x128xf32> to vector<2x16x128xf32>
    %37 = arith.truncf %15 : vector<2x8x128xf32> to vector<2x8x128xbf16>
    %38 = arith.truncf %34 : vector<2x16x128xf32> to vector<2x16x128xbf16>
    "tpu.trace_start"() <{level = 10 : i32, message = "bsd,btd->bst"}> : () -> ()
    %cst_31 = arith.constant dense<0.000000e+00> : vector<2x8x16xf32>
    %39 = tpu.matmul %37, %38, %cst_31 {dimension_numbers = #tpu.dot_dimension_numbers<[2], [2], [1], [1], [0, 0, 0, 1, 1, 1], [0], [0]>} : vector<2x8x128xbf16>, vector<2x16x128xbf16>, vector<2x8x16xf32> -> vector<2x8x16xf32>
    "tpu.trace_stop"() : () -> ()
    %40 = tpu.iota {dimensions = array<i32: 2>} : vector<2x8x16xi32>
    %41 = vector.broadcast %20 : i32 to vector<2x8x16xi32>
    %42 = arith.cmpi slt, %40, %41 : vector<2x8x16xi32>
    %cst_32 = arith.constant -1.000000e+30 : f32
    %43 = vector.broadcast %cst_32 : f32 to vector<2x8x16xf32>
    %44 = arith.select %42, %39, %43 : vector<2x8x16xi1>, vector<2x8x16xf32>
    %45 = arith.truncf %17 : vector<2x8x128xf32> to vector<2x8x128xbf16>
    "tpu.trace_start"() <{level = 10 : i32, message = "bsd,btd->bst"}> : () -> ()
    %cst_33 = arith.constant dense<0.000000e+00> : vector<2x8x8xf32>
    %46 = tpu.matmul %37, %45, %cst_33 {dimension_numbers = #tpu.dot_dimension_numbers<[2], [2], [1], [1], [0, 0, 0, 1, 1, 1], [0], [0]>} : vector<2x8x128xbf16>, vector<2x8x128xbf16>, vector<2x8x8xf32> -> vector<2x8x8xf32>
    "tpu.trace_stop"() : () -> ()
    %cst_34 = arith.constant dense<0xFF800000> : vector<2x8xf32>
    %47 = vector.multi_reduction <maximumf>, %44, %cst_34 [2] : vector<2x8x16xf32> to vector<2x8xf32>
    %48 = vector.shape_cast %47 : vector<2x8xf32> to vector<2x8x1xf32>
    %cst_35 = arith.constant dense<0xFF800000> : vector<2x8xf32>
    %49 = vector.multi_reduction <maximumf>, %46, %cst_35 [2] : vector<2x8x8xf32> to vector<2x8xf32>
    %50 = vector.shape_cast %49 : vector<2x8xf32> to vector<2x8x1xf32>
    %51 = arith.maximumf %48, %50 : vector<2x8x1xf32>
    %52 = vector.broadcast %51 : vector<2x8x1xf32> to vector<2x8x16xf32>
    %53 = arith.subf %44, %52 : vector<2x8x16xf32>
    %54 = math.exp %53 : vector<2x8x16xf32>
    %55 = vector.broadcast %51 : vector<2x8x1xf32> to vector<2x8x8xf32>
    %56 = arith.subf %46, %55 : vector<2x8x8xf32>
    %57 = math.exp %56 : vector<2x8x8xf32>
    %cst_36 = arith.constant dense<0.000000e+00> : vector<2x8xf32>
    %58 = vector.multi_reduction <add>, %54, %cst_36 [2] : vector<2x8x16xf32> to vector<2x8xf32>
    %59 = vector.shape_cast %58 : vector<2x8xf32> to vector<2x8x1xf32>
    %cst_37 = arith.constant dense<0.000000e+00> : vector<2x8xf32>
    %60 = vector.multi_reduction <add>, %57, %cst_37 [2] : vector<2x8x8xf32> to vector<2x8xf32>
    %61 = vector.shape_cast %60 : vector<2x8xf32> to vector<2x8x1xf32>
    %62 = arith.addf %59, %61 : vector<2x8x1xf32>
    %63 = tpu.reciprocal %62 {approx = true} : vector<2x8x1xf32> -> vector<2x8x1xf32>
    %64 = arith.truncf %54 : vector<2x8x16xf32> to vector<2x8x16xbf16>
    %65 = arith.truncf %36 : vector<2x16x128xf32> to vector<2x16x128xbf16>
    "tpu.trace_start"() <{level = 10 : i32, message = "bst,btd->bsd"}> : () -> ()
    %cst_38 = arith.constant dense<0.000000e+00> : vector<2x8x128xf32>
    %66 = tpu.matmul %64, %65, %cst_38 {dimension_numbers = #tpu.dot_dimension_numbers<[2], [1], [1], [2], [0, 0, 0, 1, 1, 2], [0], [0]>} : vector<2x8x16xbf16>, vector<2x16x128xbf16>, vector<2x8x128xf32> -> vector<2x8x128xf32>
    "tpu.trace_stop"() : () -> ()
    %67 = arith.truncf %57 : vector<2x8x8xf32> to vector<2x8x8xbf16>
    %68 = arith.truncf %19 : vector<2x8x128xf32> to vector<2x8x128xbf16>
    "tpu.trace_start"() <{level = 10 : i32, message = "bst,btd->bsd"}> : () -> ()
    %cst_39 = arith.constant dense<0.000000e+00> : vector<2x8x128xf32>
    %69 = tpu.matmul %67, %68, %cst_39 {dimension_numbers = #tpu.dot_dimension_numbers<[2], [1], [1], [2], [0, 0, 0, 1, 1, 2], [0], [0]>} : vector<2x8x8xbf16>, vector<2x8x128xbf16>, vector<2x8x128xf32> -> vector<2x8x128xf32>
    "tpu.trace_stop"() : () -> ()
    %70 = arith.addf %66, %69 : vector<2x8x128xf32>
    %71 = vector.broadcast %63 : vector<2x8x1xf32> to vector<2x8x128xf32>
    %72 = arith.mulf %70, %71 : vector<2x8x128xf32>
    %73 = vector.shape_cast %72 : vector<2x8x128xf32> to vector<16x128xf32>
    %74 = arith.truncf %73 : vector<16x128xf32> to vector<16x128xbf16>
    %c0_40 = arith.constant 0 : index
    %c0_41 = arith.constant 0 : index
    %c0_42 = arith.constant 0 : index
    %75 = vector.load %arg5[%c0_40, %c0_41, %c0_42] : memref<1x128x128xbf16, #tpu.memory_space<vmem>>, vector<1x128x128xbf16>
    %76 = vector.shape_cast %75 : vector<1x128x128xbf16> to vector<128x128xbf16>
    %cst_43 = arith.constant dense<0.000000e+00> : vector<16x128xf32>
    %77 = tpu.matmul %74, %76, %cst_43 {dimension_numbers = #tpu.dot_dimension_numbers<[1], [0], [0], [1], [0, 0, 1, 1], [], []>} : vector<16x128xbf16>, vector<128x128xbf16>, vector<16x128xf32> -> vector<16x128xf32>
    %c0_44 = arith.constant 0 : index
    %c0_45 = arith.constant 0 : index
    %c0_46 = arith.constant 0 : index
    %78 = vector.load %arg6[%c0_44, %c0_45, %c0_46] : memref<1x1x128xf32, #tpu.memory_space<vmem>>, vector<1x1x128xf32>
    %79 = vector.shape_cast %78 : vector<1x1x128xf32> to vector<1x128xf32>
    %80 = vector.broadcast %79 : vector<1x128xf32> to vector<16x128xf32>
    %81 = arith.addf %77, %80 : vector<16x128xf32>
    %c0_47 = arith.constant 0 : index
    %c0_48 = arith.constant 0 : index
    %82 = vector.load %arg9[%c0_47, %c0_48] : memref<16x128xf32, #tpu.memory_space<vmem>>, vector<16x128xf32>
    tpu.vector_store %arg9[%c0_47, %c0_48], %81 {strides = array<i32>} : memref<16x128xf32, #tpu.memory_space<vmem>>, vector<16x128xf32>,
    %c0_i32_49 = arith.constant 0 : i32
    %c0_i32_50 = arith.constant 0 : i32
    %c0_i32_51 = arith.constant 0 : i32
    %83 = tpu.memref_slice %arg10[%arg0, %c0_i32_50, %20, %c0_i32_51] : memref<2x2x16x128xf32, #tpu.memory_space<any>> -> memref<1x2x8x128xf32, #tpu.memory_space<any>>
    %84 = tpu.memref_slice %arg14[%c0_i32_49] : memref<2x!tpu.dma_semaphore, #tpu.memory_space<semaphore_mem>> -> memref<1x!tpu.dma_semaphore, #tpu.memory_space<semaphore_mem>>
    %85 = tpu.memref_squeeze %84 : memref<1x!tpu.dma_semaphore, #tpu.memory_space<semaphore_mem>> -> memref<!tpu.dma_semaphore, #tpu.memory_space<semaphore_mem>>
    tpu.wait_dma2 semaphore(%85 : memref<!tpu.dma_semaphore, #tpu.memory_space<semaphore_mem>>) src(%arg12 : memref<1x2x8x128xf32, #tpu.memory_space<vmem>>) dst(%83 : memref<1x2x8x128xf32, #tpu.memory_space<any>>)
    %c1_i32_52 = arith.constant 1 : i32
    %c0_i32_53 = arith.constant 0 : i32
    %c0_i32_54 = arith.constant 0 : i32
    %86 = tpu.memref_slice %arg11[%arg0, %c0_i32_53, %20, %c0_i32_54] : memref<2x2x16x128xf32, #tpu.memory_space<any>> -> memref<1x2x8x128xf32, #tpu.memory_space<any>>
    %87 = tpu.memref_slice %arg14[%c1_i32_52] : memref<2x!tpu.dma_semaphore, #tpu.memory_space<semaphore_mem>> -> memref<1x!tpu.dma_semaphore, #tpu.memory_space<semaphore_mem>>
    %88 = tpu.memref_squeeze %87 : memref<1x!tpu.dma_semaphore, #tpu.memory_space<semaphore_mem>> -> memref<!tpu.dma_semaphore, #tpu.memory_space<semaphore_mem>>
    tpu.wait_dma2 semaphore(%88 : memref<!tpu.dma_semaphore, #tpu.memory_space<semaphore_mem>>) src(%arg13 : memref<1x2x8x128xf32, #tpu.memory_space<vmem>>) dst(%86 : memref<1x2x8x128xf32, #tpu.memory_space<any>>)
    return
  }
  func.func @transform_0(%arg0: i32) -> i32 {
    %c0_i32 = arith.constant 0 : i32
    %c0_i32_0 = arith.constant 0 : i32
    return %c0_i32 : i32
  }
  func.func @transform_1(%arg0: i32) -> (i32, i32) {
    %c0_i32 = arith.constant 0 : i32
    %c0_i32_0 = arith.constant 0 : i32
    %c0_i32_1 = arith.constant 0 : i32
    return %c0_i32, %c0_i32_0 : i32, i32
  }
  func.func @transform_2(%arg0: i32) -> (i32, i32, i32) {
    %c0_i32 = arith.constant 0 : i32
    %c0_i32_0 = arith.constant 0 : i32
    %c0_i32_1 = arith.constant 0 : i32
    return %arg0, %c0_i32, %c0_i32_0 : i32, i32, i32
  }
  func.func @transform_3(%arg0: i32) -> (i32, i32, i32) {
    %c0_i32 = arith.constant 0 : i32
    %c0_i32_0 = arith.constant 0 : i32
    %c0_i32_1 = arith.constant 0 : i32
    return %arg0, %c0_i32, %c0_i32_0 : i32, i32, i32
  }
  func.func @transform_4(%arg0: i32) -> (i32, i32, i32) {
    %c0_i32 = arith.constant 0 : i32
    %c0_i32_0 = arith.constant 0 : i32
    %c0_i32_1 = arith.constant 0 : i32
    return %arg0, %c0_i32, %c0_i32_0 : i32, i32, i32
  }
  func.func @transform_5(%arg0: i32) -> (i32, i32, i32) {
    %c0_i32 = arith.constant 0 : i32
    %c0_i32_0 = arith.constant 0 : i32
    %c0_i32_1 = arith.constant 0 : i32
    return %arg0, %c0_i32, %c0_i32_0 : i32, i32, i32
  }
  func.func @transform_6(%arg0: i32) -> (i32, i32, i32, i32) {
    %c0_i32 = arith.constant 0 : i32
    %c0_i32_0 = arith.constant 0 : i32
    %c0_i32_1 = arith.constant 0 : i32
    %c0_i32_2 = arith.constant 0 : i32
    return %arg0, %c0_i32, %c0_i32_0, %c0_i32_1 : i32, i32, i32, i32
  }
  func.func @transform_7(%arg0: i32) -> (i32, i32, i32, i32) {
    %c0_i32 = arith.constant 0 : i32
    %c0_i32_0 = arith.constant 0 : i32
    %c0_i32_1 = arith.constant 0 : i32
    %c0_i32_2 = arith.constant 0 : i32
    return %arg0, %c0_i32, %c0_i32_0, %c0_i32_1 : i32, i32, i32, i32
  }
  func.func @transform_8(%arg0: i32) -> (i32, i32) {
    %c0_i32 = arith.constant 0 : i32
    %c0_i32_0 = arith.constant 0 : i32
    %c0_i32_1 = arith.constant 0 : i32
    return %c0_i32, %c0_i32_0 : i32, i32
  }
}

</mosaic_0001>

<llo_original>
// kernel: _decoder_step.1
$region0: #{_decoder_step.1}
  #allocation0 [shape = 'u32[]', space=smem, size = 0x4, offset = 0x4, fixed_abs, tag = 'smem constant byte address 0x4 - core index']
  #allocation1 [shape = 'u32[144,128]{1,0:T(1,128)}', space=vmem, size = 0x12000, scoped, tag = 'internal scratch']
  #allocation2 [shape = 'f32[1,2,8,128]{3,2,1,0:T(8,128)}', space=vmem, size = 0x2000, scoped, tag = 'scratch operand']
  #allocation3 [shape = 'f32[1,2,8,128]{3,2,1,0:T(8,128)}', space=vmem, size = 0x2000, scoped, tag = 'scratch operand']
  #allocation4 [shape = 's32[2]{0}', space=sflag, size = 0x8, scoped, tag = 'scratch operand']
  #allocation5 [shape = 's32[1]{0:T(128)S(6)}', space=smem, size = 0x200, scoped, tag = 'scoped memory for _decoder_step.1']
  #allocation16 [shape = 's32[]', space=sflag, size = 0x4, offset = 0, fixed_abs, tag = 'sflag constant byte address 0x0 - dummy sync flag']
  #allocation17 [shape = 's32[]', space=sflag, size = 0x4, offset = 0, fixed_abs, tag = 'sflag constant byte address 0x0 - dummy sync flag']
  %s0 = inlined_call_operand.<no memory space> [shape: s32[1], index: 0, kind: input, shape index: {}]
  %s1 = inlined_call_operand.hbm [shape: f32[16,128], index: 1, kind: input, shape index: {}]
  %s2 = inlined_call_operand.hbm [shape: bf16[2,128,384], index: 2, kind: input, shape index: {}]
  %s3 = inlined_call_operand.vmem [shape: f32[2,1,384], index: 3, kind: input, shape index: {}]
  %s4 = inlined_call_operand.hbm [shape: bf16[2,128,128], index: 4, kind: input, shape index: {}]
  %s5 = inlined_call_operand.vmem [shape: f32[2,1,128], index: 5, kind: input, shape index: {}]
  %s6 = inlined_call_operand.hbm [shape: f32[2,2,16,128], index: 6, kind: input, shape index: {}, may-alias: {6,9}]
  %s7 = inlined_call_operand.hbm [shape: f32[2,2,16,128], index: 7, kind: input, shape index: {}, may-alias: {7,10}]
  %s8 = inlined_call_operand.hbm [shape: f32[16,128], index: 8, kind: output, shape index: {0}]
  %s9 = inlined_call_operand.hbm [shape: f32[2,2,16,128], index: 9, kind: output, shape index: {1}, may-alias: {6,9}]
  %s10 = inlined_call_operand.hbm [shape: f32[2,2,16,128], index: 10, kind: output, shape index: {2}, may-alias: {7,10}]
  %11 = xla_tuple %s8, %s9, %s10
  %s12 = sld [smem:[#allocation0]]
  $region89: #{_decoder_step.1} parent=0
    _
  %s14 = ssub.s32 1, %s12
  %s15 = scalar_select 0, %s14, %s12
  %16 = sst [smem:[#allocation5]] %s0
  $region1: #{_decoder_step.1} parent=0
    #allocation6 [shape = 'u8[8192]{0}', space=vmem, size = 0x2000, scoped, tag = 'input window, operand 1, single buffered']
    #allocation7 [shape = 's32[2]{0}', space=sflag, size = 0x8, scoped, tag = 'scoped memory for _decoder_step.1']
    #allocation8 [shape = 's32[2]{0}', space=sflag, size = 0x8, scoped, tag = 'scoped memory for _decoder_step.1']
    #allocation9 [shape = 'u8[196608]{0}', space=vmem, size = 0x30000, scoped, tag = 'input window, operand 2']
    #allocation10 [shape = 's32[2]{0}', space=sflag, size = 0x8, scoped, tag = 'scoped memory for _decoder_step.1']
    #allocation11 [shape = 'u8[65536]{0}', space=vmem, size = 0x10000, scoped, tag = 'input window, operand 4']
    #allocation12 [shape = 'u8[32768]{0}', space=vmem, size = 0x8000, scoped, tag = 'input window, operand 6']
    #allocation13 [shape = 's32[2]{0}', space=sflag, size = 0x8, scoped, tag = 'scoped memory for _decoder_step.1']
    #allocation14 [shape = 'u8[32768]{0}', space=vmem, size = 0x8000, scoped, tag = 'input window, operand 7']
    #allocation15 [shape = 'u8[8192]{0}', space=vmem, size = 0x2000, scoped, tag = 'output window, operand 0, single buffered']
    %17 = vsyncpa [#allocation7], 0
    %18 = vsyncpa [#allocation10], 0
    %s19 = scalar_lea.sflag [#allocation10], 1
    %20 = vsyncpa %s19, 0
    %21 = vsyncpa [#allocation13], 0
    %s22 = scalar_lea.sflag [#allocation13], 1
    %23 = vsyncpa %s22, 0
    %24 = vsyncpa [#allocation8], 0
    loop: start=0, step=1, limit=4
    $region2: #{_decoder_step.1} parent=1 // loop_pre_header
      _
    $region3: #{_decoder_step.1} parent=1 // loop_header
      %s26 = sphi 0, %s30
      %p27 = scmp.ge.s32.totalorder %s26, 4
      %s34 = sphi 0, %s34
      %s36 = sphi 0, %s34
      %s37 = sphi 0, %s36
      %s51 = sphi 0, %s37
      %s55 = sphi 0, %s55
      %s57 = sphi 0, %s55
      %s58 = sphi 0, %s57
      %s72 = sphi 0, %s58
      %s78 = sphi 0, %s80
      %s81 = sphi 0, %s78
      %s82 = sphi 0, %s81
      %s98 = sphi 0, %s82
      %s104 = sphi 0, %s106
      %s107 = sphi 0, %s104
      %s108 = sphi 0, %s107
      %s124 = sphi 0, %s108
      %s130 = sphi 0, %s132
      %s133 = sphi 0, %s130
      %s134 = sphi 0, %s133
      %s150 = sphi 0, %s134
      %s156 = sphi 0, %s158
      %s159 = sphi 0, %s156
      %s160 = sphi 0, %s159
      %s176 = sphi 0, %s160
      %s182 = sphi 0, %s184
      %s185 = sphi 0, %s182
      %s186 = sphi 0, %s185
      %s202 = sphi 0, %s186
      %s208 = sphi 0, %s210
      %s211 = sphi 0, %s208
      %s212 = sphi 0, %s211
      %s228 = sphi 0, %s212
      %s232 = sphi 0, %s232
      %s234 = sphi 0, %s232
      %s235 = sphi 0, %s234
      %s249 = sphi 0, %s235
    $region4: #{_decoder_step.1} parent=1 // loop_header_branch
      %29 = sbr.rel (%p27) target = $region8
    $region5: #{_decoder_step.1} parent=1 // loop_body
      %s31 = ssub.s32 %s26, 1
      %s32 = ssub.s32 %s26, 2
      %s33 = sadd.s32 %s26, 1
      %s35 = sadd.s32 %s34, 1
      %p38 = scmp.eq.s32.totalorder %s26, 1
      %p39 = scmp.ne.s32.totalorder %s34, %s36
      %p40 = scmp.eq.s32.totalorder %s26, 0
      %p41 = por %p39, %p40
      %p42 = scmp.ne.s32.totalorder %s34, %s36
      %p43 = scmp.eq.s32.totalorder %s31, 1
      %p44 = por %p42, %p43
      %p45 = scmp.ne.s32.totalorder %s36, %s37
      %p46 = scmp.eq.s32.totalorder %s31, 0
      %p47 = por %p45, %p46
      %p48 = scmp.ne.s32.totalorder %s36, %s37
      %p49 = scmp.eq.s32.totalorder %s32, 1
      %p50 = por %p48, %p49
      %p52 = scmp.ne.s32.totalorder %s37, %s51
      %p53 = scmp.eq.s32.totalorder %s32, 0
      %p54 = por %p52, %p53
      %s56 = sadd.s32 %s55, 1
      %p59 = scmp.eq.s32.totalorder %s26, 1
      %p60 = scmp.ne.s32.totalorder %s55, %s57
      %p61 = scmp.eq.s32.totalorder %s26, 0
      %p62 = por %p60, %p61
      %p63 = scmp.ne.s32.totalorder %s55, %s57
      %p64 = scmp.eq.s32.totalorder %s31, 1
      %p65 = por %p63, %p64
      %p66 = scmp.ne.s32.totalorder %s57, %s58
      %p67 = scmp.eq.s32.totalorder %s31, 0
      %p68 = por %p66, %p67
      %p69 = scmp.ne.s32.totalorder %s57, %s58
      %p70 = scmp.eq.s32.totalorder %s32, 1
      %p71 = por %p69, %p70
      %p73 = scmp.ne.s32.totalorder %s58, %s72
      %p74 = scmp.eq.s32.totalorder %s32, 0
      %p75 = por %p73, %p74
      %s76 = ssub.s32 %s26, %s33
      %p77 = scmp.eq.s32.totalorder %s76, 0
      %s79 = sadd.s32 %s78, 1
      %s80 = scalar_select %p77, %s78, %s79
      %p83 = pneg %p77
      %p84 = scmp.eq.s32.totalorder %s26, 1
      %p85 = por %p83, %p84
      %p86 = scmp.ne.s32.totalorder %s78, %s81
      %p87 = scmp.eq.s32.totalorder %s26, 0
      %p88 = por %p86, %p87
      %p89 = scmp.ne.s32.totalorder %s78, %s81
      %p90 = scmp.eq.s32.totalorder %s31, 1
      %p91 = por %p89, %p90
      %p92 = scmp.ne.s32.totalorder %s81, %s82
      %p93 = scmp.eq.s32.totalorder %s31, 0
      %p94 = por %p92, %p93
      %p95 = scmp.ne.s32.totalorder %s81, %s82
      %p96 = scmp.eq.s32.totalorder %s32, 1
      %p97 = por %p95, %p96
      %p99 = scmp.ne.s32.totalorder %s82, %s98
      %p100 = scmp.eq.s32.totalorder %s32, 0
      %p101 = por %p99, %p100
      %s102 = ssub.s32 %s26, %s33
      %p103 = scmp.eq.s32.totalorder %s102, 0
      %s105 = sadd.s32 %s104, 1
      %s106 = scalar_select %p103, %s104, %s105
      %p109 = pneg %p103
      %p110 = scmp.eq.s32.totalorder %s26, 1
      %p111 = por %p109, %p110
      %p112 = scmp.ne.s32.totalorder %s104, %s107
      %p113 = scmp.eq.s32.totalorder %s26, 0
      %p114 = por %p112, %p113
      %p115 = scmp.ne.s32.totalorder %s104, %s107
      %p116 = scmp.eq.s32.totalorder %s31, 1
      %p117 = por %p115, %p116
      %p118 = scmp.ne.s32.totalorder %s107, %s108
      %p119 = scmp.eq.s32.totalorder %s31, 0
      %p120 = por %p118, %p119
      %p121 = scmp.ne.s32.totalorder %s107, %s108
      %p122 = scmp.eq.s32.totalorder %s32, 1
      %p123 = por %p121, %p122
      %p125 = scmp.ne.s32.totalorder %s108, %s124
      %p126 = scmp.eq.s32.totalorder %s32, 0
      %p127 = por %p125, %p126
      %s128 = ssub.s32 %s26, %s33
      %p129 = scmp.eq.s32.totalorder %s128, 0
      %s131 = sadd.s32 %s130, 1
      %s132 = scalar_select %p129, %s130, %s131
      %p135 = pneg %p129
      %p136 = scmp.eq.s32.totalorder %s26, 1
      %p137 = por %p135, %p136
      %p138 = scmp.ne.s32.totalorder %s130, %s133
      %p139 = scmp.eq.s32.totalorder %s26, 0
      %p140 = por %p138, %p139
      %p141 = scmp.ne.s32.totalorder %s130, %s133
      %p142 = scmp.eq.s32.totalorder %s31, 1
      %p143 = por %p141, %p142
      %p144 = scmp.ne.s32.totalorder %s133, %s134
      %p145 = scmp.eq.s32.totalorder %s31, 0
      %p146 = por %p144, %p145
      %p147 = scmp.ne.s32.totalorder %s133, %s134
      %p148 = scmp.eq.s32.totalorder %s32, 1
      %p149 = por %p147, %p148
      %p151 = scmp.ne.s32.totalorder %s134, %s150
      %p152 = scmp.eq.s32.totalorder %s32, 0
      %p153 = por %p151, %p152
      %s154 = ssub.s32 %s26, %s33
      %p155 = scmp.eq.s32.totalorder %s154, 0
      %s157 = sadd.s32 %s156, 1
      %s158 = scalar_select %p155, %s156, %s157
      %p161 = pneg %p155
      %p162 = scmp.eq.s32.totalorder %s26, 1
      %p163 = por %p161, %p162
      %p164 = scmp.ne.s32.totalorder %s156, %s159
      %p165 = scmp.eq.s32.totalorder %s26, 0
      %p166 = por %p164, %p165
      %p167 = scmp.ne.s32.totalorder %s156, %s159
      %p168 = scmp.eq.s32.totalorder %s31, 1
      %p169 = por %p167, %p168
      %p170 = scmp.ne.s32.totalorder %s159, %s160
      %p171 = scmp.eq.s32.totalorder %s31, 0
      %p172 = por %p170, %p171
      %p173 = scmp.ne.s32.totalorder %s159, %s160
      %p174 = scmp.eq.s32.totalorder %s32, 1
      %p175 = por %p173, %p174
      %p177 = scmp.ne.s32.totalorder %s160, %s176
      %p178 = scmp.eq.s32.totalorder %s32, 0
      %p179 = por %p177, %p178
      %s180 = ssub.s32 %s26, %s33
      %p181 = scmp.eq.s32.totalorder %s180, 0
      %s183 = sadd.s32 %s182, 1
      %s184 = scalar_select %p181, %s182, %s183
      %p187 = pneg %p181
      %p188 = scmp.eq.s32.totalorder %s26, 1
      %p189 = por %p187, %p188
      %p190 = scmp.ne.s32.totalorder %s182, %s185
      %p191 = scmp.eq.s32.totalorder %s26, 0
      %p192 = por %p190, %p191
      %p193 = scmp.ne.s32.totalorder %s182, %s185
      %p194 = scmp.eq.s32.totalorder %s31, 1
      %p195 = por %p193, %p194
      %p196 = scmp.ne.s32.totalorder %s185, %s186
      %p197 = scmp.eq.s32.totalorder %s31, 0
      %p198 = por %p196, %p197
      %p199 = scmp.ne.s32.totalorder %s185, %s186
      %p200 = scmp.eq.s32.totalorder %s32, 1
      %p201 = por %p199, %p200
      %p203 = scmp.ne.s32.totalorder %s186, %s202
      %p204 = scmp.eq.s32.totalorder %s32, 0
      %p205 = por %p203, %p204
      %s206 = ssub.s32 %s26, %s33
      %p207 = scmp.eq.s32.totalorder %s206, 0
      %s209 = sadd.s32 %s208, 1
      %s210 = scalar_select %p207, %s208, %s209
      %p213 = pneg %p207
      %p214 = scmp.eq.s32.totalorder %s26, 1
      %p215 = por %p213, %p214
      %p216 = scmp.ne.s32.totalorder %s208, %s211
      %p217 = scmp.eq.s32.totalorder %s26, 0
      %p218 = por %p216, %p217
      %p219 = scmp.ne.s32.totalorder %s208, %s211
      %p220 = scmp.eq.s32.totalorder %s31, 1
      %p221 = por %p219, %p220
      %p222 = scmp.ne.s32.totalorder %s211, %s212
      %p223 = scmp.eq.s32.totalorder %s31, 0
      %p224 = por %p222, %p223
      %p225 = scmp.ne.s32.totalorder %s211, %s212
      %p226 = scmp.eq.s32.totalorder %s32, 1
      %p227 = por %p225, %p226
      %p229 = scmp.ne.s32.totalorder %s212, %s228
      %p230 = scmp.eq.s32.totalorder %s32, 0
      %p231 = por %p229, %p230
      %s233 = sadd.s32 %s232, 1
      %p236 = scmp.eq.s32.totalorder %s26, 1
      %p237 = scmp.ne.s32.totalorder %s232, %s234
      %p238 = scmp.eq.s32.totalorder %s26, 0
      %p239 = por %p237, %p238
      %p240 = scmp.ne.s32.totalorder %s232, %s234
      %p241 = scmp.eq.s32.totalorder %s31, 1
      %p242 = por %p240, %p241
      %p243 = scmp.ne.s32.totalorder %s234, %s235
      %p244 = scmp.eq.s32.totalorder %s31, 0
      %p245 = por %p243, %p244
      %p246 = scmp.ne.s32.totalorder %s234, %s235
      %p247 = scmp.eq.s32.totalorder %s32, 1
      %p248 = por %p246, %p247
      %p250 = scmp.ne.s32.totalorder %s235, %s249
      %p251 = scmp.eq.s32.totalorder %s32, 0
      %p252 = por %p250, %p251
      %p253 = scmp.le.s32.totalorder 1, %s26
      %p254 = scmp.lt.s32.totalorder %s26, 3
      %p255 = pnand %p253, %p254
      %p256 = pneg %p255
      // Predicated region
      $region9: #{_decoder_step.1} parent=5 // pred_check
        _
      $region10: #{_decoder_step.1} parent=5 // pred_check_branch
        %258 = sbr.rel (%p255) target = $region12
      $region11: #{_decoder_step.1} parent=5 // pred_region
        %s259 = ssub.s32 %s26, 1
        // Predicated region
        $region13: #{_decoder_step.1} parent=11 // pred_check
          %p260 = pneg %p47
        $region14: #{_decoder_step.1} parent=11 // pred_check_branch
          %262 = sbr.rel (%p260) target = $region16
        $region15: #{_decoder_step.1} parent=11 // pred_region
          _
        $region16: #{_decoder_step.1} parent=11 // pred_fallthru
          _
        // Predicated region
        $region17: #{_decoder_step.1} parent=11 // pred_check
          %p263 = pneg %p68
        $region18: #{_decoder_step.1} parent=11 // pred_check_branch
          %265 = sbr.rel (%p263) target = $region20
        $region19: #{_decoder_step.1} parent=11 // pred_region
          %s267 = ssub.s32 256, 256
          %268 = vsyncadd [#allocation7], %s267
          %s269 = sshll.u32 [#allocation6], 4
          %s270 = int_to_ptr.vmem [resolvable:$true] %s269
          %275 = dma.hbm_to_vmem [thread:$0]  %s1, 256, %s270, [#allocation7], 128, 128, 8
        $region20: #{_decoder_step.1} parent=11 // pred_fallthru
          _
      $region12: #{_decoder_step.1} parent=5 // pred_fallthru
        _
      %p276 = scmp.lt.s32.totalorder %s26, 2
      // Predicated region
      $region21: #{_decoder_step.1} parent=5 // pred_check
        %p277 = pneg %p276
      $region22: #{_decoder_step.1} parent=5 // pred_check_branch
        %279 = sbr.rel (%p277) target = $region24
      $region23: #{_decoder_step.1} parent=5 // pred_region
        // Predicated region
        $region25: #{_decoder_step.1} parent=23 // pred_check
          %p280 = pneg %p88
        $region26: #{_decoder_step.1} parent=23 // pred_check_branch
          %282 = sbr.rel (%p280) target = $region28
        $region27: #{_decoder_step.1} parent=23 // pred_region
          %s283 = sand.u32 %s26, 1
          %s284 = scalar_lea.sflag [#allocation10], %s283
          %s285 = sand.u32 %s78, 1
          %s286 = smul.addr %s285, 192
          %s287 = scalar_lea.vmem [#allocation9], %s286
          %s289 = ssub.s32 3072, 3072
          %290 = vsyncadd %s284, %s289
          %s291 = smul.addr %s26, 48
          %s292 = smul.addr %s291, 64
          %s293 = scalar_lea.hbm %s2, %s292
          %s294 = sshll.u32 %s287, 4
          %s295 = int_to_ptr.vmem [resolvable:$true] %s294
          %300 = dma.hbm_to_vmem [thread:$0]  %s293, 3072, %s295, %s284, 192, 192, 12
        $region28: #{_decoder_step.1} parent=23 // pred_fallthru
          _
        // Predicated region
        $region29: #{_decoder_step.1} parent=23 // pred_check
          %p301 = pneg %p114
        $region30: #{_decoder_step.1} parent=23 // pred_check_branch
          %303 = sbr.rel (%p301) target = $region32
        $region31: #{_decoder_step.1} parent=23 // pred_region
          %p304 = scmp.lt.s32.totalorder %s26, 1
          %s305 = scalar_select %p304, %s26, 1
          %s306 = smul.addr %s305, 3
          %s307 = scalar_lea.vmem %s3, %s306
        $region32: #{_decoder_step.1} parent=23 // pred_fallthru
          _
        // Predicated region
        $region33: #{_decoder_step.1} parent=23 // pred_check
          %p308 = pneg %p140
        $region34: #{_decoder_step.1} parent=23 // pred_check_branch
          %310 = sbr.rel (%p308) target = $region36
        $region35: #{_decoder_step.1} parent=23 // pred_region
          %s311 = sand.u32 %s26, 1
          %s312 = scalar_lea.sflag [#allocation10], %s311
          %s313 = sand.u32 %s130, 1
          %s314 = smul.addr %s313, 64
          %s315 = scalar_lea.vmem [#allocation11], %s314
          %s317 = ssub.s32 1024, 1024
          %318 = vsyncadd %s312, %s317
          %s319 = smul.addr %s26, 16
          %s320 = smul.addr %s319, 64
          %s321 = scalar_lea.hbm %s4, %s320
          %s322 = sshll.u32 %s315, 4
          %s323 = int_to_ptr.vmem [resolvable:$true] %s322
          %328 = dma.hbm_to_vmem [thread:$0]  %s321, 1024, %s323, %s312, 64, 64, 4
        $region36: #{_decoder_step.1} parent=23 // pred_fallthru
          _
        // Predicated region
        $region37: #{_decoder_step.1} parent=23 // pred_check
          %p329 = pneg %p166
        $region38: #{_decoder_step.1} parent=23 // pred_check_branch
          %331 = sbr.rel (%p329) target = $region40
        $region39: #{_decoder_step.1} parent=23 // pred_region
          %p332 = scmp.lt.s32.totalorder %s26, 1
          %s333 = scalar_select %p332, %s26, 1
          %s334 = scalar_lea.vmem %s5, %s333
        $region40: #{_decoder_step.1} parent=23 // pred_fallthru
          _
        // Predicated region
        $region41: #{_decoder_step.1} parent=23 // pred_check
          %p335 = pneg %p192
        $region42: #{_decoder_step.1} parent=23 // pred_check_branch
          %337 = sbr.rel (%p335) target = $region44
        $region43: #{_decoder_step.1} parent=23 // pred_region
          %s338 = sand.u32 %s26, 1
          %s339 = scalar_lea.sflag [#allocation13], %s338
          %s340 = sand.u32 %s182, 1
          %s341 = smul.addr %s340, 32
          %s342 = scalar_lea.vmem [#allocation12], %s341
          %s344 = ssub.s32 512, 512
          %345 = vsyncadd %s339, %s344
          %s346 = smul.addr %s26, 4
          %s347 = smul.addr %s346, 128
          %s348 = scalar_lea.hbm %s6, %s347
          %s349 = sshll.u32 %s342, 4
          %s350 = int_to_ptr.vmem [resolvable:$true] %s349
          %355 = dma.hbm_to_vmem [thread:$0]  %s348, 512, %s350, %s339, 128, 128, 8
        $region44: #{_decoder_step.1} parent=23 // pred_fallthru
          _
        // Predicated region
        $region45: #{_decoder_step.1} parent=23 // pred_check
          %p356 = pneg %p218
        $region46: #{_decoder_step.1} parent=23 // pred_check_branch
          %358 = sbr.rel (%p356) target = $region48
        $region47: #{_decoder_step.1} parent=23 // pred_region
          %s359 = sand.u32 %s26, 1
          %s360 = scalar_lea.sflag [#allocation13], %s359
          %s361 = sand.u32 %s208, 1
          %s362 = smul.addr %s361, 32
          %s363 = scalar_lea.vmem [#allocation14], %s362
          %s365 = ssub.s32 512, 512
          %366 = vsyncadd %s360, %s365
          %s367 = smul.addr %s26, 4
          %s368 = smul.addr %s367, 128
          %s369 = scalar_lea.hbm %s7, %s368
          %s370 = sshll.u32 %s363, 4
          %s371 = int_to_ptr.vmem [resolvable:$true] %s370
          %376 = dma.hbm_to_vmem [thread:$0]  %s369, 512, %s371, %s360, 128, 128, 8
        $region48: #{_decoder_step.1} parent=23 // pred_fallthru
          _
      $region24: #{_decoder_step.1} parent=5 // pred_fallthru
        _
      %p377 = scmp.le.s32.totalorder 1, %s26
      %p378 = scmp.lt.s32.totalorder %s26, 3
      %p379 = pnand %p377, %p378
      %p380 = pneg %p379
      // Predicated region
      $region49: #{_decoder_step.1} parent=5 // pred_check
        _
      $region50: #{_decoder_step.1} parent=5 // pred_check_branch
        %382 = sbr.rel (%p379) target = $region52
      $region51: #{_decoder_step.1} parent=5 // pred_region
        %s383 = ssub.s32 %s26, 1
        // Predicated region
        $region53: #{_decoder_step.1} parent=51 // pred_check
          %p384 = pneg %p68
        $region54: #{_decoder_step.1} parent=51 // pred_check_branch
          %386 = sbr.rel (%p384) target = $region56
        $region55: #{_decoder_step.1} parent=51 // pred_region
          %387 = dma.done [#allocation7], 256
        $region56: #{_decoder_step.1} parent=51 // pred_fallthru
          _
        %s388 = sand.u32 %s31, 1
        %s389 = scalar_lea.sflag [#allocation10], %s388
        %s390 = sand.u32 %s81, 1
        %s391 = smul.addr %s390, 192
        %s392 = scalar_lea.vmem [#allocation9], %s391
        // Predicated region
        $region57: #{_decoder_step.1} parent=51 // pred_check
          %p393 = pneg %p94
        $region58: #{_decoder_step.1} parent=51 // pred_check_branch
          %395 = sbr.rel (%p393) target = $region60
        $region59: #{_decoder_step.1} parent=51 // pred_region
          %396 = dma.done %s389, 3072
        $region60: #{_decoder_step.1} parent=51 // pred_fallthru
          _
        %s397 = sand.u32 %s31, 1
        %s398 = scalar_lea.sflag [#allocation10], %s397
        %s399 = sand.u32 %s133, 1
        %s400 = smul.addr %s399, 64
        %s401 = scalar_lea.vmem [#allocation11], %s400
        // Predicated region
        $region61: #{_decoder_step.1} parent=51 // pred_check
          %p402 = pneg %p146
        $region62: #{_decoder_step.1} parent=51 // pred_check_branch
          %404 = sbr.rel (%p402) target = $region64
        $region63: #{_decoder_step.1} parent=51 // pred_region
          %405 = dma.done %s398, 1024
        $region64: #{_decoder_step.1} parent=51 // pred_fallthru
          _
        %s406 = sand.u32 %s31, 1
        %s407 = scalar_lea.sflag [#allocation13], %s406
        %s408 = sand.u32 %s185, 1
        %s409 = smul.addr %s408, 32
        %s410 = scalar_lea.vmem [#allocation12], %s409
        // Predicated region
        $region65: #{_decoder_step.1} parent=51 // pred_check
          %p411 = pneg %p198
        $region66: #{_decoder_step.1} parent=51 // pred_check_branch
          %413 = sbr.rel (%p411) target = $region68
        $region67: #{_decoder_step.1} parent=51 // pred_region
          %414 = dma.done %s407, 512
        $region68: #{_decoder_step.1} parent=51 // pred_fallthru
          _
        %s415 = sand.u32 %s31, 1
        %s416 = scalar_lea.sflag [#allocation13], %s415
        %s417 = sand.u32 %s211, 1
        %s418 = smul.addr %s417, 32
        %s419 = scalar_lea.vmem [#allocation14], %s418
        // Predicated region
        $region69: #{_decoder_step.1} parent=51 // pred_check
          %p420 = pneg %p224
        $region70: #{_decoder_step.1} parent=51 // pred_check_branch
          %422 = sbr.rel (%p420) target = $region72
        $region71: #{_decoder_step.1} parent=51 // pred_region
          %423 = dma.done %s416, 512
        $region72: #{_decoder_step.1} parent=51 // pred_fallthru
          _
        %p424 = pneg %p47
        %p425 = pneg %p44
        %p426 = pneg %p68
        %p427 = pneg %p65
        %s428 = sand.u32 %s31, 1
        %s429 = scalar_lea.sflag [#allocation10], %s428
        %s430 = sand.u32 %s81, 1
        %s431 = smul.addr %s430, 192
        %s432 = scalar_lea.vmem [#allocation9], %s431
        %p433 = pneg %p94
        %p434 = pneg %p91
        %p435 = scmp.lt.s32.totalorder %s31, 1
        %s436 = scalar_select %p435, %s31, 1
        %s437 = smul.addr %s436, 3
        %s438 = scalar_lea.vmem %s3, %s437
        %p439 = pneg %p120
        %p440 = pneg %p117
        %s441 = sand.u32 %s31, 1
        %s442 = scalar_lea.sflag [#allocation10], %s441
        %s443 = sand.u32 %s133, 1
        %s444 = smul.addr %s443, 64
        %s445 = scalar_lea.vmem [#allocation11], %s444
        %p446 = pneg %p146
        %p447 = pneg %p143
        %p448 = scmp.lt.s32.totalorder %s31, 1
        %s449 = scalar_select %p448, %s31, 1
        %s450 = scalar_lea.vmem %s5, %s449
        %p451 = pneg %p172
        %p452 = pneg %p169
        %s453 = sand.u32 %s31, 1
        %s454 = scalar_lea.sflag [#allocation13], %s453
        %s455 = sand.u32 %s185, 1
        %s456 = smul.addr %s455, 32
        %s457 = scalar_lea.vmem [#allocation12], %s456
        %p458 = pneg %p198
        %p459 = pneg %p195
        %s460 = sand.u32 %s31, 1
        %s461 = scalar_lea.sflag [#allocation13], %s460
        %s462 = sand.u32 %s211, 1
        %s463 = smul.addr %s462, 32
        %s464 = scalar_lea.vmem [#allocation14], %s463
        %p465 = pneg %p224
        %p466 = pneg %p221
        %p467 = pneg %p245
        %p468 = pneg %p242
        %p469 = scmp.lt.s32.totalorder %s31, 1
        %s470 = scalar_select %p469, %s31, 1
        %s471 = smul.addr %s470, 3
        %s472 = scalar_lea.vmem %s3, %s471
        %p473 = scmp.lt.s32.totalorder %s31, 1
        %s474 = scalar_select %p473, %s31, 1
        %s475 = scalar_lea.vmem %s5, %s474
        %p477 = scmp.eq.s32.totalorder %s31, 0
        // Predicated region
        $region73: #{_decoder_step.1} parent=51 // pred_check
          %p478 = pneg %p477
        $region74: #{_decoder_step.1} parent=51 // pred_check_branch
          %480 = sbr.rel (%p478) target = $region76
        $region75: #{_decoder_step.1} parent=51 // pred_region
          %v481 = vld [vmem:[#allocation6] sm:$0xff]
          %v482 = vld [vmem:[#allocation6 + $0x8] sm:$0xff]
          %483 = vst [vmem:[#allocation15] sm:$0xff] %v481
          %484 = vst [vmem:[#allocation15 + $0x8] sm:$0xff] %v482
        $region76: #{_decoder_step.1} parent=51 // pred_fallthru
          _
        %v485 = vld [vmem:[#allocation15] sm:$0xff]
        %v486 = vld [vmem:[#allocation15 + $0x8] sm:$0xff]
        %v487 = vpack.c.bf16 %v486, %v485
        %v488 = vld [vmem:[%s392] sm:$0xff]
        %v489 = vld [vmem:[%s392 + $0x8] sm:$0xf]
        %v490 = vld [vmem:[%s392 + $0xc] sm:$0xff]
        %v491 = vld [vmem:[%s392 + $0x14] sm:$0xf]
        %v492 = vld [vmem:[%s392 + $0x18] sm:$0xff]
        %v493 = vld [vmem:[%s392 + $0x20] sm:$0xf]
        %v494 = vld [vmem:[%s392 + $0x24] sm:$0xff]
        %v495 = vld [vmem:[%s392 + $0x2c] sm:$0xf]
        %v496 = vld [vmem:[%s392 + $0x30] sm:$0xff]
        %v497 = vld [vmem:[%s392 + $0x38] sm:$0xf]
        %v498 = vld [vmem:[%s392 + $0x3c] sm:$0xff]
        %v499 = vld [vmem:[%s392 + $0x44] sm:$0xf]
        %v500 = vld [vmem:[%s392 + $0x48] sm:$0xff]
        %v501 = vld [vmem:[%s392 + $0x50] sm:$0xf]
        %v502 = vld [vmem:[%s392 + $0x54] sm:$0xff]
        %v503 = vld [vmem:[%s392 + $0x5c] sm:$0xf]
        %v504 = vld [vmem:[%s392 + $0x60] sm:$0xff]
        %v505 = vld [vmem:[%s392 + $0x68] sm:$0xf]
        %v506 = vld [vmem:[%s392 + $0x6c] sm:$0xff]
        %v507 = vld [vmem:[%s392 + $0x74] sm:$0xf]
        %v508 = vld [vmem:[%s392 + $0x78] sm:$0xff]
        %v509 = vld [vmem:[%s392 + $0x80] sm:$0xf]
        %v510 = vld [vmem:[%s392 + $0x84] sm:$0xff]
        %v511 = vld [vmem:[%s392 + $0x8c] sm:$0xf]
        %v512 = vld [vmem:[%s392 + $0x90] sm:$0xff]
        %v513 = vld [vmem:[%s392 + $0x98] sm:$0xf]
        %v514 = vld [vmem:[%s392 + $0x9c] sm:$0xff]
        %v515 = vld [vmem:[%s392 + $0xa4] sm:$0xf]
        %v516 = vld [vmem:[%s392 + $0xa8] sm:$0xff]
        %v517 = vld [vmem:[%s392 + $0xb0] sm:$0xf]
        %v518 = vld [vmem:[%s392 + $0xb4] sm:$0xff]
        %v519 = vld [vmem:[%s392 + $0xbc] sm:$0xf]
        %v520 = vld [vmem:[%s472] sm:$0x7]
        %v522 = vlaneseq
        %v523 = vshrl.u32 %v522, 7
        %v524 = vsub.s32 0, %v523
        %v525 = vrot.slane %v520, %v524
        %v526 = vlaneseq
        %v527 = vshrl.u32 %v526, 7
        %v528 = vsub.s32 1, %v527
        %v529 = vrot.slane %v520, %v528
        %v530 = vlaneseq
        %v531 = vshrl.u32 %v530, 7
        %v532 = vsub.s32 2, %v531
        %v533 = vrot.slane %v520, %v532
        %v569 = vunpack.c.l.b16 %v488
        %v570 = vunpack.c.h.b16 %v488
        %v571 = vunpack.c.l.b16 %v489
        %v572 = vunpack.c.l.b16 %v490
        %v573 = vunpack.c.h.b16 %v490
        %v574 = vunpack.c.l.b16 %v491
        %v575 = vunpack.c.l.b16 %v492
        %v576 = vunpack.c.h.b16 %v492
        %v577 = vunpack.c.l.b16 %v493
        %v578 = vunpack.c.l.b16 %v494
        %v579 = vunpack.c.h.b16 %v494
        %v580 = vunpack.c.l.b16 %v495
        %v581 = vunpack.c.l.b16 %v496
        %v582 = vunpack.c.h.b16 %v496
        %v583 = vunpack.c.l.b16 %v497
        %v584 = vunpack.c.l.b16 %v498
        %v585 = vunpack.c.h.b16 %v498
        %v586 = vunpack.c.l.b16 %v499
        %v587 = vunpack.c.l.b16 %v500
        %v588 = vunpack.c.h.b16 %v500
        %v589 = vunpack.c.l.b16 %v501
        %v590 = vunpack.c.l.b16 %v502
        %v591 = vunpack.c.h.b16 %v502
        %v592 = vunpack.c.l.b16 %v503
        %v593 = vunpack.c.l.b16 %v504
        %v594 = vunpack.c.h.b16 %v504
        %v595 = vunpack.c.l.b16 %v505
        %v596 = vunpack.c.l.b16 %v506
        %v597 = vunpack.c.h.b16 %v506
        %v598 = vunpack.c.l.b16 %v507
        %v599 = vunpack.c.l.b16 %v508
        %v600 = vunpack.c.h.b16 %v508
        %v601 = vunpack.c.l.b16 %v509
        %v602 = vunpack.c.l.b16 %v510
        %v603 = vunpack.c.h.b16 %v510
        %v604 = vunpack.c.l.b16 %v511
        %v605 = vunpack.c.l.b16 %v512
        %v606 = vunpack.c.h.b16 %v512
        %v607 = vunpack.c.l.b16 %v513
        %v608 = vunpack.c.l.b16 %v514
        %v609 = vunpack.c.h.b16 %v514
        %v610 = vunpack.c.l.b16 %v515
        %v611 = vunpack.c.l.b16 %v516
        %v612 = vunpack.c.h.b16 %v516
        %v613 = vunpack.c.l.b16 %v517
        %v614 = vunpack.c.l.b16 %v518
        %v615 = vunpack.c.h.b16 %v518
        %v616 = vunpack.c.l.b16 %v519
        %v617 = vpack.c.b16 %v572, %v569
        %v618 = vpack.c.b16 %v573, %v570
        %v619 = vpack.c.b16 %v574, %v571
        %v620 = vpack.c.b16 %v578, %v575
        %v621 = vpack.c.b16 %v579, %v576
        %v622 = vpack.c.b16 %v580, %v577
        %v623 = vpack.c.b16 %v584, %v581
        %v624 = vpack.c.b16 %v585, %v582
        %v625 = vpack.c.b16 %v586, %v583
        %v626 = vpack.c.b16 %v590, %v587
        %v627 = vpack.c.b16 %v591, %v588
        %v628 = vpack.c.b16 %v592, %v589
        %v629 = vpack.c.b16 %v596, %v593
        %v630 = vpack.c.b16 %v597, %v594
        %v631 = vpack.c.b16 %v598, %v595
        %v632 = vpack.c.b16 %v602, %v599
        %v633 = vpack.c.b16 %v603, %v600
        %v634 = vpack.c.b16 %v604, %v601
        %v635 = vpack.c.b16 %v608, %v605
        %v636 = vpack.c.b16 %v609, %v606
        %v637 = vpack.c.b16 %v610, %v607
        %v638 = vpack.c.b16 %v614, %v611
        %v639 = vpack.c.b16 %v615, %v612
        %v640 = vpack.c.b16 %v616, %v613
        %665 = vmatprep.subr.bf16.mxu0 %v618
        %666 = vmatpush1.bf16.msra.mxu0 %v617
        %667 = vmatprep.subr.bf16.mxu0 %v621
        %668 = vmatpush1.bf16.msra.mxu0 %v620
        %669 = vmatprep.subr.bf16.mxu0 %v624
        %670 = vmatpush1.bf16.msra.mxu0 %v623
        %671 = vmatprep.subr.bf16.mxu0 %v627
        %672 = vmatpush1.bf16.msra.mxu0 %v626
        %673 = vmatprep.subr.bf16.mxu0 %v630
        %674 = vmatpush1.bf16.msra.mxu0 %v629
        %675 = vmatprep.subr.bf16.mxu0 %v633
        %676 = vmatpush1.bf16.msra.mxu0 %v632
        %677 = vmatprep.subr.bf16.mxu0 %v636
        %678 = vmatpush1.bf16.msra.mxu0 %v635
        %679 = vmatprep.subr.bf16.mxu0 %v639
        %680 = vmatpush1.bf16.msra.mxu0 %v638
        %681 = vmatprep.subr.bf16.mxu0 0
        %682 = vmatpush1.bf16.msra.mxu0 0
        %683 = vmatprep.subr.bf16.mxu0 0
        %684 = vmatpush1.bf16.msra.mxu0 0
        %685 = vmatprep.subr.bf16.mxu0 0
        %686 = vmatpush1.bf16.msra.mxu0 0
        %687 = vmatprep.subr.bf16.mxu0 0
        %688 = vmatpush1.bf16.msra.mxu0 0
        %689 = vmatprep.subr.bf16.mxu0 0
        %690 = vmatpush1.bf16.msra.mxu0 0
        %691 = vmatprep.subr.bf16.mxu0 0
        %692 = vmatpush1.bf16.msra.mxu0 0
        %693 = vmatprep.subr.bf16.mxu0 0
        %694 = vmatpush1.bf16.msra.mxu0 0
        %695 = vmatprep.subr.bf16.mxu0 0
        %696 = vmatpush1.bf16.msra.mxu0 0
        %697 = vmatprep.mubr.bf16.mxu0 0
        %698 = vmatmul.mubr.bf16.gmra.mrb[0].mxu0 %v487
        %v699 = vpop.f32.mrb[0].mxu0
        %v700 = vadd.f32 %v525, %v699
        %v701 = vpop.f32.mrb[0].mxu0
        %v702 = vadd.f32 %v529, %v701
        %v703 = vpop.f32.mrb[0].mxu0
        %v704 = vadd.f32 %v525, %v703
        %v705 = vpop.f32.mrb[0].mxu0
        %v706 = vadd.f32 %v529, %v705
        %707 = vdwg.mxu0
        %708 = vmatprep.subr.bf16.mxu0 0
        %709 = vmatpush1.bf16.msra.mxu0 %v619
        %710 = vmatprep.subr.bf16.mxu0 0
        %711 = vmatpush1.bf16.msra.mxu0 %v622
        %712 = vmatprep.subr.bf16.mxu0 0
        %713 = vmatpush1.bf16.msra.mxu0 %v625
        %714 = vmatprep.subr.bf16.mxu0 0
        %715 = vmatpush1.bf16.msra.mxu0 %v628
        %716 = vmatprep.subr.bf16.mxu0 0
        %717 = vmatpush1.bf16.msra.mxu0 %v631
        %718 = vmatprep.subr.bf16.mxu0 0
        %719 = vmatpush1.bf16.msra.mxu0 %v634
        %720 = vmatprep.subr.bf16.mxu0 0
        %721 = vmatpush1.bf16.msra.mxu0 %v637
        %722 = vmatprep.subr.bf16.mxu0 0
        %723 = vmatpush1.bf16.msra.mxu0 %v640
        %724 = vmatprep.subr.bf16.mxu0 0
        %725 = vmatpush1.bf16.msra.mxu0 0
        %726 = vmatprep.subr.bf16.mxu0 0
        %727 = vmatpush1.bf16.msra.mxu0 0
        %728 = vmatprep.subr.bf16.mxu0 0
        %729 = vmatpush1.bf16.msra.mxu0 0
        %730 = vmatprep.subr.bf16.mxu0 0
        %731 = vmatpush1.bf16.msra.mxu0 0
        %732 = vmatprep.subr.bf16.mxu0 0
        %733 = vmatpush1.bf16.msra.mxu0 0
        %734 = vmatprep.subr.bf16.mxu0 0
        %735 = vmatpush1.bf16.msra.mxu0 0
        %736 = vmatprep.subr.bf16.mxu0 0
        %737 = vmatpush1.bf16.msra.mxu0 0
        %738 = vmatprep.subr.bf16.mxu0 0
        %739 = vmatpush1.bf16.msra.mxu0 0
        %740 = vmatprep.mubr.bf16.mxu0 0
        %741 = vmatmul.mubr.bf16.gmra.mrb[0].mxu0 %v487
        %v742 = vpop.f32.mrb[0].mxu0
        %v743 = vadd.f32 %v533, %v742
        %v744 = vpop.f32.mrb[0].mxu0
        %v745 = vpop.f32.mrb[0].mxu0
        %v746 = vadd.f32 %v533, %v745
        %v747 = vpop.f32.mrb[0].mxu0
        %748 = vdwg.mxu0
        %v749 = vmul.f32 %v700, 0.088388346
        %v750 = vmul.f32 %v704, 0.088388346
        %s751 = sld [smem:[#allocation5]]
        %752 = vst [vmem:[#allocation2] sm:$0xff] %v702
        %753 = vst [vmem:[#allocation2 + $0x8] sm:$0xff] %v706
        %754 = vst [vmem:[#allocation3] sm:$0xff] %v743
        %755 = vst [vmem:[#allocation3 + $0x8] sm:$0xff] %v746
        %s756 = smul.u32 %s31, 32
        %s757 = sadd.s32 %s751, %s756
        %s758 = smul.addr %s757, 16
        %s759 = scalar_lea.hbm %s9, %s758
        %s761 = sshll.u32 [#allocation2], 4
        %s762 = int_to_ptr.vmem [resolvable:$true] %s761
        %764 = dma.vmem_to_hbm [thread:$0]  %s762, 256, %s759, [#allocation4], 128, 256, 8
        %s765 = smul.addr %s757, 16
        %s766 = scalar_lea.hbm %s10, %s765
        %s767 = scalar_lea.sflag [#allocation4], 1
        %s769 = sshll.u32 [#allocation3], 4
        %s770 = int_to_ptr.vmem [resolvable:$true] %s769
        %772 = dma.vmem_to_hbm [thread:$0]  %s770, 256, %s766, %s767, 128, 256, 8
        %v773 = vld [vmem:[%s410] sm:$0xff]
        %v774 = vld [vmem:[%s410 + $0x8] sm:$0xff]
        %v775 = vld [vmem:[%s410 + $0x10] sm:$0xff]
        %v776 = vld [vmem:[%s410 + $0x18] sm:$0xff]
        %v777 = vld [vmem:[%s419] sm:$0xff]
        %v778 = vld [vmem:[%s419 + $0x8] sm:$0xff]
        %v779 = vld [vmem:[%s419 + $0x10] sm:$0xff]
        %v780 = vld [vmem:[%s419 + $0x18] sm:$0xff]
        %v781 = vpack.c.bf16 %v749, %v749
        %v782 = vpack.c.bf16 %v750, %v750
        %v783 = vpack.c.bf16 %v774, %v773
        %v784 = vpack.c.bf16 %v776, %v775
        %785 = vmatprep.subr.bf16.mxu0 0
        %786 = vmatpush1.bf16.xpose.msra.mxu0 %v783
        %787 = vmatprep.subr.bf16.mxu0 0
        %788 = vmatpush1.bf16.xpose.msra.mxu0 0
        %789 = vmatprep.subr.bf16.mxu0 0
        %790 = vmatpush1.bf16.xpose.msra.mxu0 0
        %791 = vmatprep.subr.bf16.mxu0 0
        %792 = vmatpush1.bf16.xpose.msra.mxu0 0
        %793 = vmatprep.subr.bf16.mxu0 0
        %794 = vmatpush1.bf16.xpose.msra.mxu0 0
        %795 = vmatprep.subr.bf16.mxu0 0
        %796 = vmatpush1.bf16.xpose.msra.mxu0 0
        %797 = vmatprep.subr.bf16.mxu0 0
        %798 = vmatpush1.bf16.xpose.msra.mxu0 0
        %799 = vmatprep.subr.bf16.mxu0 0
        %800 = vmatpush1.bf16.xpose.msra.mxu0 0
        %801 = vmatprep.subr.bf16.mxu0 0
        %802 = vmatpush1.bf16.xpose.msra.mxu0 0
        %803 = vmatprep.subr.bf16.mxu0 0
        %804 = vmatpush1.bf16.xpose.msra.mxu0 0
        %805 = vmatprep.subr.bf16.mxu0 0
        %806 = vmatpush1.bf16.xpose.msra.mxu0 0
        %807 = vmatprep.subr.bf16.mxu0 0
        %808 = vmatpush1.bf16.xpose.msra.mxu0 0
        %809 = vmatprep.subr.bf16.mxu0 0
        %810 = vmatpush1.bf16.xpose.msra.mxu0 0
        %811 = vmatprep.subr.bf16.mxu0 0
        %812 = vmatpush1.bf16.xpose.msra.mxu0 0
        %813 = vmatprep.subr.bf16.mxu0 0
        %814 = vmatpush1.bf16.xpose.msra.mxu0 0
        %815 = vmatprep.subr.bf16.mxu0 0
        %816 = vmatpush1.bf16.xpose.msra.mxu0 0
        %817 = vmatprep.mubr.bf16.mxu0 0
        %818 = vmatmul.mubr.bf16.gmra.mrb[0].mxu0 %v781
        %v819 = vpop.f32.mrb[0].mxu0
        %v820 = vadd.f32 0.0, %v819
        %v821 = vpop.f32.mrb[0].mxu0
        %v822 = vpop.f32.mrb[0].mxu0
        %v823 = vpop.f32.mrb[0].mxu0
        %824 = vdwg.mxu0
        %825 = vmatprep.subr.bf16.mxu0 0
        %826 = vmatpush1.bf16.xpose.msra.mxu0 %v784
        %827 = vmatprep.subr.bf16.mxu0 0
        %828 = vmatpush1.bf16.xpose.msra.mxu0 0
        %829 = vmatprep.subr.bf16.mxu0 0
        %830 = vmatpush1.bf16.xpose.msra.mxu0 0
        %831 = vmatprep.subr.bf16.mxu0 0
        %832 = vmatpush1.bf16.xpose.msra.mxu0 0
        %833 = vmatprep.subr.bf16.mxu0 0
        %834 = vmatpush1.bf16.xpose.msra.mxu0 0
        %835 = vmatprep.subr.bf16.mxu0 0
        %836 = vmatpush1.bf16.xpose.msra.mxu0 0
        %837 = vmatprep.subr.bf16.mxu0 0
        %838 = vmatpush1.bf16.xpose.msra.mxu0 0
        %839 = vmatprep.subr.bf16.mxu0 0
        %840 = vmatpush1.bf16.xpose.msra.mxu0 0
        %841 = vmatprep.subr.bf16.mxu0 0
        %842 = vmatpush1.bf16.xpose.msra.mxu0 0
        %843 = vmatprep.subr.bf16.mxu0 0
        %844 = vmatpush1.bf16.xpose.msra.mxu0 0
        %845 = vmatprep.subr.bf16.mxu0 0
        %846 = vmatpush1.bf16.xpose.msra.mxu0 0
        %847 = vmatprep.subr.bf16.mxu0 0
        %848 = vmatpush1.bf16.xpose.msra.mxu0 0
        %849 = vmatprep.subr.bf16.mxu0 0
        %850 = vmatpush1.bf16.xpose.msra.mxu0 0
        %851 = vmatprep.subr.bf16.mxu0 0
        %852 = vmatpush1.bf16.xpose.msra.mxu0 0
        %853 = vmatprep.subr.bf16.mxu0 0
        %854 = vmatpush1.bf16.xpose.msra.mxu0 0
        %855 = vmatprep.subr.bf16.mxu0 0
        %856 = vmatpush1.bf16.xpose.msra.mxu0 0
        %857 = vmatprep.mubr.bf16.mxu0 0
        %858 = vmatmul.mubr.bf16.gmra.mrb[0].mxu0 %v782
        %v859 = vpop.f32.mrb[0].mxu0
        %v860 = vadd.f32 0.0, %v859
        %v861 = vpop.f32.mrb[0].mxu0
        %v862 = vpop.f32.mrb[0].mxu0
        %v863 = vpop.f32.mrb[0].mxu0
        %864 = vdwg.mxu0
        %v865 = vlaneseq
        %v866 = vand.u32 %v865, 127
        %v867 = vstv %s751
        %vm868 = vcmp.lt.s32.totalorder %v866, %v867
        %v869 = vsel %vm868, %v820, -1e+30
        %v870 = vsel %vm868, %v860, -1e+30
        %v871 = vpack.c.bf16 %v702, %v702
        %v872 = vpack.c.bf16 %v706, %v706
        %873 = vmatprep.subr.bf16.mxu0 0
        %874 = vmatpush1.bf16.xpose.msra.mxu0 %v871
        %875 = vmatprep.subr.bf16.mxu0 0
        %876 = vmatpush1.bf16.xpose.msra.mxu0 0
        %877 = vmatprep.subr.bf16.mxu0 0
        %878 = vmatpush1.bf16.xpose.msra.mxu0 0
        %879 = vmatprep.subr.bf16.mxu0 0
        %880 = vmatpush1.bf16.xpose.msra.mxu0 0
        %881 = vmatprep.subr.bf16.mxu0 0
        %882 = vmatpush1.bf16.xpose.msra.mxu0 0
        %883 = vmatprep.subr.bf16.mxu0 0
        %884 = vmatpush1.bf16.xpose.msra.mxu0 0
        %885 = vmatprep.subr.bf16.mxu0 0
        %886 = vmatpush1.bf16.xpose.msra.mxu0 0
        %887 = vmatprep.subr.bf16.mxu0 0
        %888 = vmatpush1.bf16.xpose.msra.mxu0 0
        %889 = vmatprep.subr.bf16.mxu0 0
        %890 = vmatpush1.bf16.xpose.msra.mxu0 0
        %891 = vmatprep.subr.bf16.mxu0 0
        %892 = vmatpush1.bf16.xpose.msra.mxu0 0
        %893 = vmatprep.subr.bf16.mxu0 0
        %894 = vmatpush1.bf16.xpose.msra.mxu0 0
        %895 = vmatprep.subr.bf16.mxu0 0
        %896 = vmatpush1.bf16.xpose.msra.mxu0 0
        %897 = vmatprep.subr.bf16.mxu0 0
        %898 = vmatpush1.bf16.xpose.msra.mxu0 0
        %899 = vmatprep.subr.bf16.mxu0 0
        %900 = vmatpush1.bf16.xpose.msra.mxu0 0
        %901 = vmatprep.subr.bf16.mxu0 0
        %902 = vmatpush1.bf16.xpose.msra.mxu0 0
        %903 = vmatprep.subr.bf16.mxu0 0
        %904 = vmatpush1.bf16.xpose.msra.mxu0 0
        %905 = vmatprep.mubr.bf16.mxu0 0
        %906 = vmatmul.mubr.bf16.gmra.mrb[0].mxu0 %v781
        %v907 = vpop.f32.mrb[0].mxu0
        %v908 = vadd.f32 0.0, %v907
        %v909 = vpop.f32.mrb[0].mxu0
        %v910 = vpop.f32.mrb[0].mxu0
        %v911 = vpop.f32.mrb[0].mxu0
        %912 = vdwg.mxu0
        %913 = vmatprep.subr.bf16.mxu0 0
        %914 = vmatpush1.bf16.xpose.msra.mxu0 %v872
        %915 = vmatprep.subr.bf16.mxu0 0
        %916 = vmatpush1.bf16.xpose.msra.mxu0 0
        %917 = vmatprep.subr.bf16.mxu0 0
        %918 = vmatpush1.bf16.xpose.msra.mxu0 0
        %919 = vmatprep.subr.bf16.mxu0 0
        %920 = vmatpush1.bf16.xpose.msra.mxu0 0
        %921 = vmatprep.subr.bf16.mxu0 0
        %922 = vmatpush1.bf16.xpose.msra.mxu0 0
        %923 = vmatprep.subr.bf16.mxu0 0
        %924 = vmatpush1.bf16.xpose.msra.mxu0 0
        %925 = vmatprep.subr.bf16.mxu0 0
        %926 = vmatpush1.bf16.xpose.msra.mxu0 0
        %927 = vmatprep.subr.bf16.mxu0 0
        %928 = vmatpush1.bf16.xpose.msra.mxu0 0
        %929 = vmatprep.subr.bf16.mxu0 0
        %930 = vmatpush1.bf16.xpose.msra.mxu0 0
        %931 = vmatprep.subr.bf16.mxu0 0
        %932 = vmatpush1.bf16.xpose.msra.mxu0 0
        %933 = vmatprep.subr.bf16.mxu0 0
        %934 = vmatpush1.bf16.xpose.msra.mxu0 0
        %935 = vmatprep.subr.bf16.mxu0 0
        %936 = vmatpush1.bf16.xpose.msra.mxu0 0
        %937 = vmatprep.subr.bf16.mxu0 0
        %938 = vmatpush1.bf16.xpose.msra.mxu0 0
        %939 = vmatprep.subr.bf16.mxu0 0
        %940 = vmatpush1.bf16.xpose.msra.mxu0 0
        %941 = vmatprep.subr.bf16.mxu0 0
        %942 = vmatpush1.bf16.xpose.msra.mxu0 0
        %943 = vmatprep.subr.bf16.mxu0 0
        %944 = vmatpush1.bf16.xpose.msra.mxu0 0
        %945 = vmatprep.mubr.bf16.mxu0 0
        %946 = vmatmul.mubr.bf16.gmra.mrb[0].mxu0 %v782
        %v947 = vpop.f32.mrb[0].mxu0
        %v948 = vadd.f32 0.0, %v947
        %v949 = vpop.f32.mrb[0].mxu0
        %v950 = vpop.f32.mrb[0].mxu0
        %v951 = vpop.f32.mrb[0].mxu0
        %952 = vdwg.mxu0
        %vm953 = vcmask 130048
        %v954 = vsel %vm953, %v869, -inf
        %955 = vmax.xlane.f32.xlu0 %v954
        %v956 = vpop.xlane.xlu0 %955
        %v957 = vsel %vm953, %v870, -inf
        %958 = vmax.xlane.f32.xlu0 %v957
        %v959 = vpop.xlane.xlu0 %958
        %vm960 = vcmask 64512
        %v961 = vsel %vm960, %v908, -inf
        %962 = vmax.xlane.f32.xlu0 %v961
        %v963 = vpop.xlane.xlu0 %962
        %v964 = vsel %vm960, %v948, -inf
        %965 = vmax.xlane.f32.xlu0 %v964
        %v966 = vpop.xlane.xlu0 %965
        %v967 = vmax.f32 %v956, %v963
        %v968 = vmax.f32 %v959, %v966
        %v969 = vsub.f32 %v869, %v967
        %v970 = vsub.f32 %v870, %v968
        %v971 = vmul.f32 %v969, 1.442695
        %v972 = vpow.pop %v971
        %v973 = vmul.f32 %v970, 1.442695
        %v974 = vpow.pop %v973
        %v975 = vsub.f32 %v908, %v967
        %v976 = vsub.f32 %v948, %v968
        %v977 = vmul.f32 %v975, 1.442695
        %v978 = vpow.pop %v977
        %v979 = vmul.f32 %v976, 1.442695
        %v980 = vpow.pop %v979
        %v981 = vsel %vm953, %v972, 0.0
        %982 = vadd.xlane.f32.xlu0 %v981
        %v983 = vpop.xlane.xlu0 %982
        %v984 = vsel %vm953, %v974, 0.0
        %985 = vadd.xlane.f32.xlu0 %v984
        %v986 = vpop.xlane.xlu0 %985
        %v987 = vsel %vm960, %v978, 0.0
        %988 = vadd.xlane.f32.xlu0 %v987
        %v989 = vpop.xlane.xlu0 %988
        %v990 = vsel %vm960, %v980, 0.0
        %991 = vadd.xlane.f32.xlu0 %v990
        %v992 = vpop.xlane.xlu0 %991
        %v993 = vadd.f32 %v983, %v989
        %v994 = vadd.f32 %v986, %v992
        %v995 = vrcp.pop %v993
        %v996 = vrcp.pop %v994
        %v997 = vpack.c.bf16 %v972, %v972
        %v998 = vpack.c.bf16 %v974, %v974
        %v999 = vpack.c.bf16 %v778, %v777
        %v1000 = vpack.c.bf16 %v780, %v779
        %v1001 = vpack.c.bf16 %v978, %v978
        %v1002 = vpack.c.bf16 %v980, %v980
        %v1003 = vpack.c.bf16 %v743, %v743
        %v1004 = vpack.c.bf16 %v746, %v746
        %v1006 = vsel %vm960, %v1001, 0
        %vm1008 = vcmask 1043456
        %v1010 = vsel %vm1008, %v1003, 0
        %1012 = vmatprep.subr.bf16.mxu0 0
        %1013 = vmatpush1.bf16.msra.mxu0 %v1010
        %1014 = vmatprep.subr.bf16.mxu0 0
        %1015 = vmatpush1.bf16.msra.mxu0 0
        %1016 = vmatprep.subr.bf16.mxu0 0
        %1017 = vmatpush1.bf16.msra.mxu0 0
        %1018 = vmatprep.subr.bf16.mxu0 0
        %1019 = vmatpush1.bf16.msra.mxu0 0
        %1020 = vmatprep.subr.bf16.mxu0 0
        %1021 = vmatpush1.bf16.msra.mxu0 0
        %1022 = vmatprep.subr.bf16.mxu0 0
        %1023 = vmatpush1.bf16.msra.mxu0 0
        %1024 = vmatprep.subr.bf16.mxu0 0
        %1025 = vmatpush1.bf16.msra.mxu0 0
        %1026 = vmatprep.subr.bf16.mxu0 0
        %1027 = vmatpush1.bf16.msra.mxu0 0
        %1028 = vmatprep.subr.bf16.mxu0 0
        %1029 = vmatpush1.bf16.msra.mxu0 0
        %1030 = vmatprep.subr.bf16.mxu0 0
        %1031 = vmatpush1.bf16.msra.mxu0 0
        %1032 = vmatprep.subr.bf16.mxu0 0
        %1033 = vmatpush1.bf16.msra.mxu0 0
        %1034 = vmatprep.subr.bf16.mxu0 0
        %1035 = vmatpush1.bf16.msra.mxu0 0
        %1036 = vmatprep.subr.bf16.mxu0 0
        %1037 = vmatpush1.bf16.msra.mxu0 0
        %1038 = vmatprep.subr.bf16.mxu0 0
        %1039 = vmatpush1.bf16.msra.mxu0 0
        %1040 = vmatprep.subr.bf16.mxu0 0
        %1041 = vmatpush1.bf16.msra.mxu0 0
        %1042 = vmatprep.subr.bf16.mxu0 0
        %1043 = vmatpush1.bf16.msra.mxu0 0
        %1044 = vmatprep.mubr.bf16.mxu0 0
        %1045 = vmatmul.mubr.bf16.gmra.mrb[0].mxu0 %v1006
        %v1046 = vpop.f32.mrb[0].mxu0
        %v1047 = vadd.f32 0.0, %v1046
        %v1048 = vpop.f32.mrb[0].mxu0
        %v1049 = vpop.f32.mrb[0].mxu0
        %v1050 = vpop.f32.mrb[0].mxu0
        %1051 = vdwg.mxu0
        %v1053 = vsel %vm960, %v1002, 0
        %v1056 = vsel %vm1008, %v1004, 0
        %1058 = vmatprep.subr.bf16.mxu0 0
        %1059 = vmatpush1.bf16.msra.mxu0 %v1056
        %1060 = vmatprep.subr.bf16.mxu0 0
        %1061 = vmatpush1.bf16.msra.mxu0 0
        %1062 = vmatprep.subr.bf16.mxu0 0
        %1063 = vmatpush1.bf16.msra.mxu0 0
        %1064 = vmatprep.subr.bf16.mxu0 0
        %1065 = vmatpush1.bf16.msra.mxu0 0
        %1066 = vmatprep.subr.bf16.mxu0 0
        %1067 = vmatpush1.bf16.msra.mxu0 0
        %1068 = vmatprep.subr.bf16.mxu0 0
        %1069 = vmatpush1.bf16.msra.mxu0 0
        %1070 = vmatprep.subr.bf16.mxu0 0
        %1071 = vmatpush1.bf16.msra.mxu0 0
        %1072 = vmatprep.subr.bf16.mxu0 0
        %1073 = vmatpush1.bf16.msra.mxu0 0
        %1074 = vmatprep.subr.bf16.mxu0 0
        %1075 = vmatpush1.bf16.msra.mxu0 0
        %1076 = vmatprep.subr.bf16.mxu0 0
        %1077 = vmatpush1.bf16.msra.mxu0 0
        %1078 = vmatprep.subr.bf16.mxu0 0
        %1079 = vmatpush1.bf16.msra.mxu0 0
        %1080 = vmatprep.subr.bf16.mxu0 0
        %1081 = vmatpush1.bf16.msra.mxu0 0
        %1082 = vmatprep.subr.bf16.mxu0 0
        %1083 = vmatpush1.bf16.msra.mxu0 0
        %1084 = vmatprep.subr.bf16.mxu0 0
        %1085 = vmatpush1.bf16.msra.mxu0 0
        %1086 = vmatprep.subr.bf16.mxu0 0
        %1087 = vmatpush1.bf16.msra.mxu0 0
        %1088 = vmatprep.subr.bf16.mxu0 0
        %1089 = vmatpush1.bf16.msra.mxu0 0
        %1090 = vmatprep.mubr.bf16.mxu0 0
        %1091 = vmatmul.mubr.bf16.gmra.mrb[0].mxu0 %v1053
        %v1092 = vpop.f32.mrb[0].mxu0
        %v1093 = vadd.f32 0.0, %v1092
        %v1094 = vpop.f32.mrb[0].mxu0
        %v1095 = vpop.f32.mrb[0].mxu0
        %v1096 = vpop.f32.mrb[0].mxu0
        %1097 = vdwg.mxu0
        %v1099 = vsel %vm953, %v997, 0
        %1101 = vmatprep.subr.bf16.mxu0 0
        %1102 = vmatpush1.bf16.msra.mxu0 %v999
        %1103 = vmatprep.subr.bf16.mxu0 0
        %1104 = vmatpush1.bf16.msra.mxu0 0
        %1105 = vmatprep.subr.bf16.mxu0 0
        %1106 = vmatpush1.bf16.msra.mxu0 0
        %1107 = vmatprep.subr.bf16.mxu0 0
        %1108 = vmatpush1.bf16.msra.mxu0 0
        %1109 = vmatprep.subr.bf16.mxu0 0
        %1110 = vmatpush1.bf16.msra.mxu0 0
        %1111 = vmatprep.subr.bf16.mxu0 0
        %1112 = vmatpush1.bf16.msra.mxu0 0
        %1113 = vmatprep.subr.bf16.mxu0 0
        %1114 = vmatpush1.bf16.msra.mxu0 0
        %1115 = vmatprep.subr.bf16.mxu0 0
        %1116 = vmatpush1.bf16.msra.mxu0 0
        %1117 = vmatprep.subr.bf16.mxu0 0
        %1118 = vmatpush1.bf16.msra.mxu0 0
        %1119 = vmatprep.subr.bf16.mxu0 0
        %1120 = vmatpush1.bf16.msra.mxu0 0
        %1121 = vmatprep.subr.bf16.mxu0 0
        %1122 = vmatpush1.bf16.msra.mxu0 0
        %1123 = vmatprep.subr.bf16.mxu0 0
        %1124 = vmatpush1.bf16.msra.mxu0 0
        %1125 = vmatprep.subr.bf16.mxu0 0
        %1126 = vmatpush1.bf16.msra.mxu0 0
        %1127 = vmatprep.subr.bf16.mxu0 0
        %1128 = vmatpush1.bf16.msra.mxu0 0
        %1129 = vmatprep.subr.bf16.mxu0 0
        %1130 = vmatpush1.bf16.msra.mxu0 0
        %1131 = vmatprep.subr.bf16.mxu0 0
        %1132 = vmatpush1.bf16.msra.mxu0 0
        %1133 = vmatprep.mubr.bf16.mxu0 0
        %1134 = vmatmul.mubr.bf16.gmra.mrb[0].mxu0 %v1099
        %v1135 = vpop.f32.mrb[0].mxu0
        %v1136 = vadd.f32 %v1047, %v1135
        %v1137 = vpop.f32.mrb[0].mxu0
        %v1138 = vpop.f32.mrb[0].mxu0
        %v1139 = vpop.f32.mrb[0].mxu0
        %1140 = vdwg.mxu0
        %v1142 = vsel %vm953, %v998, 0
        %1144 = vmatprep.subr.bf16.mxu0 0
        %1145 = vmatpush1.bf16.msra.mxu0 %v1000
        %1146 = vmatprep.subr.bf16.mxu0 0
        %1147 = vmatpush1.bf16.msra.mxu0 0
        %1148 = vmatprep.subr.bf16.mxu0 0
        %1149 = vmatpush1.bf16.msra.mxu0 0
        %1150 = vmatprep.subr.bf16.mxu0 0
        %1151 = vmatpush1.bf16.msra.mxu0 0
        %1152 = vmatprep.subr.bf16.mxu0 0
        %1153 = vmatpush1.bf16.msra.mxu0 0
        %1154 = vmatprep.subr.bf16.mxu0 0
        %1155 = vmatpush1.bf16.msra.mxu0 0
        %1156 = vmatprep.subr.bf16.mxu0 0
        %1157 = vmatpush1.bf16.msra.mxu0 0
        %1158 = vmatprep.subr.bf16.mxu0 0
        %1159 = vmatpush1.bf16.msra.mxu0 0
        %1160 = vmatprep.subr.bf16.mxu0 0
        %1161 = vmatpush1.bf16.msra.mxu0 0
        %1162 = vmatprep.subr.bf16.mxu0 0
        %1163 = vmatpush1.bf16.msra.mxu0 0
        %1164 = vmatprep.subr.bf16.mxu0 0
        %1165 = vmatpush1.bf16.msra.mxu0 0
        %1166 = vmatprep.subr.bf16.mxu0 0
        %1167 = vmatpush1.bf16.msra.mxu0 0
        %1168 = vmatprep.subr.bf16.mxu0 0
        %1169 = vmatpush1.bf16.msra.mxu0 0
        %1170 = vmatprep.subr.bf16.mxu0 0
        %1171 = vmatpush1.bf16.msra.mxu0 0
        %1172 = vmatprep.subr.bf16.mxu0 0
        %1173 = vmatpush1.bf16.msra.mxu0 0
        %1174 = vmatprep.subr.bf16.mxu0 0
        %1175 = vmatpush1.bf16.msra.mxu0 0
        %1176 = vmatprep.mubr.bf16.mxu0 0
        %1177 = vmatmul.mubr.bf16.gmra.mrb[0].mxu0 %v1142
        %v1178 = vpop.f32.mrb[0].mxu0
        %v1179 = vadd.f32 %v1093, %v1178
        %v1180 = vpop.f32.mrb[0].mxu0
        %v1181 = vpop.f32.mrb[0].mxu0
        %v1182 = vpop.f32.mrb[0].mxu0
        %1183 = vdwg.mxu0
        %v1184 = vmul.f32 %v1136, %v995
        %v1185 = vmul.f32 %v1179, %v996
        %v1186 = vpack.c.bf16 %v1185, %v1184
        %v1187 = vld [vmem:[%s401] sm:$0xf]
        %v1188 = vld [vmem:[%s401 + $0x4] sm:$0xf]
        %v1189 = vld [vmem:[%s401 + $0x8] sm:$0xf]
        %v1190 = vld [vmem:[%s401 + $0xc] sm:$0xf]
        %v1191 = vld [vmem:[%s401 + $0x10] sm:$0xf]
        %v1192 = vld [vmem:[%s401 + $0x14] sm:$0xf]
        %v1193 = vld [vmem:[%s401 + $0x18] sm:$0xf]
        %v1194 = vld [vmem:[%s401 + $0x1c] sm:$0xf]
        %v1195 = vld [vmem:[%s401 + $0x20] sm:$0xf]
        %v1196 = vld [vmem:[%s401 + $0x24] sm:$0xf]
        %v1197 = vld [vmem:[%s401 + $0x28] sm:$0xf]
        %v1198 = vld [vmem:[%s401 + $0x2c] sm:$0xf]
        %v1199 = vld [vmem:[%s401 + $0x30] sm:$0xf]
        %v1200 = vld [vmem:[%s401 + $0x34] sm:$0xf]
        %v1201 = vld [vmem:[%s401 + $0x38] sm:$0xf]
        %v1202 = vld [vmem:[%s401 + $0x3c] sm:$0xf]
        %v1203 = vld [vmem:[%s475] sm:$0x1]
        %v1205 = vlaneseq
        %v1206 = vshrl.u32 %v1205, 7
        %v1207 = vsub.s32 0, %v1206
        %v1208 = vrot.slane %v1203, %v1207
        %v1226 = vunpack.c.l.b16 %v1187
        %v1227 = vunpack.c.l.b16 %v1188
        %v1228 = vunpack.c.l.b16 %v1189
        %v1229 = vunpack.c.l.b16 %v1190
        %v1230 = vunpack.c.l.b16 %v1191
        %v1231 = vunpack.c.l.b16 %v1192
        %v1232 = vunpack.c.l.b16 %v1193
        %v1233 = vunpack.c.l.b16 %v1194
        %v1234 = vunpack.c.l.b16 %v1195
        %v1235 = vunpack.c.l.b16 %v1196
        %v1236 = vunpack.c.l.b16 %v1197
        %v1237 = vunpack.c.l.b16 %v1198
        %v1238 = vunpack.c.l.b16 %v1199
        %v1239 = vunpack.c.l.b16 %v1200
        %v1240 = vunpack.c.l.b16 %v1201
        %v1241 = vunpack.c.l.b16 %v1202
        %v1242 = vpack.c.b16 %v1227, %v1226
        %v1243 = vpack.c.b16 %v1229, %v1228
        %v1244 = vpack.c.b16 %v1231, %v1230
        %v1245 = vpack.c.b16 %v1233, %v1232
        %v1246 = vpack.c.b16 %v1235, %v1234
        %v1247 = vpack.c.b16 %v1237, %v1236
        %v1248 = vpack.c.b16 %v1239, %v1238
        %v1249 = vpack.c.b16 %v1241, %v1240
        %1258 = vmatprep.subr.bf16.mxu0 0
        %1259 = vmatpush1.bf16.msra.mxu0 %v1242
        %1260 = vmatprep.subr.bf16.mxu0 0
        %1261 = vmatpush1.bf16.msra.mxu0 %v1243
        %1262 = vmatprep.subr.bf16.mxu0 0
        %1263 = vmatpush1.bf16.msra.mxu0 %v1244
        %1264 = vmatprep.subr.bf16.mxu0 0
        %1265 = vmatpush1.bf16.msra.mxu0 %v1245
        %1266 = vmatprep.subr.bf16.mxu0 0
        %1267 = vmatpush1.bf16.msra.mxu0 %v1246
        %1268 = vmatprep.subr.bf16.mxu0 0
        %1269 = vmatpush1.bf16.msra.mxu0 %v1247
        %1270 = vmatprep.subr.bf16.mxu0 0
        %1271 = vmatpush1.bf16.msra.mxu0 %v1248
        %1272 = vmatprep.subr.bf16.mxu0 0
        %1273 = vmatpush1.bf16.msra.mxu0 %v1249
        %1274 = vmatprep.subr.bf16.mxu0 0
        %1275 = vmatpush1.bf16.msra.mxu0 0
        %1276 = vmatprep.subr.bf16.mxu0 0
        %1277 = vmatpush1.bf16.msra.mxu0 0
        %1278 = vmatprep.subr.bf16.mxu0 0
        %1279 = vmatpush1.bf16.msra.mxu0 0
        %1280 = vmatprep.subr.bf16.mxu0 0
        %1281 = vmatpush1.bf16.msra.mxu0 0
        %1282 = vmatprep.subr.bf16.mxu0 0
        %1283 = vmatpush1.bf16.msra.mxu0 0
        %1284 = vmatprep.subr.bf16.mxu0 0
        %1285 = vmatpush1.bf16.msra.mxu0 0
        %1286 = vmatprep.subr.bf16.mxu0 0
        %1287 = vmatpush1.bf16.msra.mxu0 0
        %1288 = vmatprep.subr.bf16.mxu0 0
        %1289 = vmatpush1.bf16.msra.mxu0 0
        %1290 = vmatprep.mubr.bf16.mxu0 0
        %1291 = vmatmul.mubr.bf16.gmra.mrb[0].mxu0 %v1186
        %v1292 = vpop.f32.mrb[0].mxu0
        %v1293 = vadd.f32 %v1208, %v1292
        %v1294 = vpop.f32.mrb[0].mxu0
        %v1295 = vpop.f32.mrb[0].mxu0
        %v1296 = vadd.f32 %v1208, %v1295
        %v1297 = vpop.f32.mrb[0].mxu0
        %1298 = vdwg.mxu0
        %1299 = vst [vmem:[#allocation15] sm:$0xff] %v1293
        %1300 = vst [vmem:[#allocation15 + $0x8] sm:$0xff] %v1296
        %s1301 = smul.u32 1, 2
        %s1302 = smul.u32 %s1301, 8
        %s1303 = smul.u32 %s1302, 1
        %s1304 = sshll.u32 %s1303, 4
        %1305 = dma.done [#allocation4], %s1304
        %s1306 = sshll.u32 %s1303, 4
        %1307 = dma.done %s767, %s1306
        // Predicated region
        $region77: #{_decoder_step.1} parent=51 // pred_check
          %p1308 = pneg %p242
        $region78: #{_decoder_step.1} parent=51 // pred_check_branch
          %1310 = sbr.rel (%p1308) target = $region80
        $region79: #{_decoder_step.1} parent=51 // pred_region
          %s1312 = ssub.s32 256, 256
          %1313 = vsyncadd [#allocation8], %s1312
          %s1314 = sshll.u32 [#allocation15], 4
          %s1315 = int_to_ptr.vmem [resolvable:$true] %s1314
          %1320 = dma.vmem_to_hbm [thread:$0]  %s1315, 256, %s8, [#allocation8], 128, 128, 8
        $region80: #{_decoder_step.1} parent=51 // pred_fallthru
          _
        // Predicated region
        $region81: #{_decoder_step.1} parent=51 // pred_check
          %p1321 = pneg %p242
        $region82: #{_decoder_step.1} parent=51 // pred_check_branch
          %1323 = sbr.rel (%p1321) target = $region84
        $region83: #{_decoder_step.1} parent=51 // pred_region
          %1324 = dma.done [#allocation8], 256
        $region84: #{_decoder_step.1} parent=51 // pred_fallthru
          _
      $region52: #{_decoder_step.1} parent=5 // pred_fallthru
        _
      %p1325 = scmp.le.s32.totalorder 2, %s26
      // Predicated region
      $region85: #{_decoder_step.1} parent=5 // pred_check
        %p1326 = pneg %p1325
      $region86: #{_decoder_step.1} parent=5 // pred_check_branch
        %1328 = sbr.rel (%p1326) target = $region88
      $region87: #{_decoder_step.1} parent=5 // pred_region
        %s1329 = ssub.s32 %s26, 2
      $region88: #{_decoder_step.1} parent=5 // pred_fallthru
        _
    $region6: #{_decoder_step.1} parent=1 // loop_footer
      %s30 = sadd.s32 1, %s26
    $region7: #{_decoder_step.1} parent=1 // loop_footer_branch
      %25 = sbr.rel target = $region3
    $region8: #{_decoder_step.1} parent=1 // loop_exit
      _
    %1330 = vsyncpa [#allocation7], 1
    %s1331 = scalar_lea.sflag [#allocation7], 1
    %1332 = vsyncpa %s1331, 1
    %1333 = vsyncpa [#allocation10], 1
    %s1334 = scalar_lea.sflag [#allocation10], 1
    %1335 = vsyncpa %s1334, 1
    %1336 = vsyncpa [#allocation13], 1
    %s1337 = scalar_lea.sflag [#allocation13], 1
    %1338 = vsyncpa %s1337, 1
    %1339 = vsyncpa [#allocation8], 1
    %s1340 = scalar_lea.sflag [#allocation8], 1
    %1341 = vsyncpa %s1340, 1
  %1342 = vsyncmov [#allocation4]
  %s1343 = vpop.sfrf %1342
  %p1344 = scmp.eq.s32.totalorder %s1343, 0
  %p1345 = pneg %p1344
  %1347 = shalt.err (%p1345)
  %s1348 = scalar_lea.sflag [#allocation4], 1
  %1349 = vsyncmov %s1348
  %s1350 = vpop.sfrf %1349
  %p1351 = scmp.eq.s32.totalorder %s1350, 0
  %p1352 = pneg %p1351
  %1354 = shalt.err (%p1352)

</llo_original>
